<compile_context>
chip_gen: v6e
topology: v6e:2x2x1
jax: 0.10.0
libtpu: 0.0.40
codegen_flags: <defaults>
</compile_context>

<pallas_src>
import functools

import jax
import jax.numpy as jnp
from jax.experimental import pallas as pl
from jax.experimental.pallas import tpu as pltpu


def _round_up(x, m):
    return ((x + m - 1) // m) * m


# ---------------------------------------------------------------------------
# in-kernel building blocks (trace inside the fused Pallas kernel)
# ---------------------------------------------------------------------------

def _conv_encoder_same(x2, B, L, C, w_flat, b, pad_ref):
    """'same' 1-D conv with all filter banks pre-stacked: im2col + ONE matmul.

    x2:      (B*L, C)  channels-last rows
    w_flat:  (K*C, D)  stacked + flattened conv weight
    b:       (1, D)
    pad_ref: (B, L + K - 1, C) VMEM scratch for the zero halo
    returns  (B*L, D)
    """
    K = w_flat.shape[0] // C
    lo = K // 2                      # left halo rows
    hi = K - 1 - lo                  # right halo rows
    f32 = jnp.float32
    # Zero only the halos; interior is one sub-slice store (no redundant
    # full-slab zero followed by an overwrite).
    pad_ref[:, :lo, :] = jnp.zeros((B, lo, C), f32)
    pad_ref[:, lo + L:, :] = jnp.zeros((B, hi, C), f32)
    pad_ref[:, lo:lo + L, :] = x2.reshape(B, L, C)
    im2col = jnp.concatenate(
        [pad_ref[:, k:k + L, :] for k in range(K)], axis=-1)      # (B, L, K*C)
    enc2 = jnp.dot(im2col.reshape(B * L, K * C), w_flat,
                   preferred_element_type=f32) + b                # (B*L, D)
    return enc2


def _masked_attention_pool(enc2, enc3, lengths, w1, b1, w2, b2):
    """AttentionWithContext with a length mask, batched over the level.

    enc2: (B*L, D) flat encodings (for the MXU matmul)
    enc3: (B, L, D) same data, 3-D view
    lengths: (B, 1, 1) int32
    w1: (D, A)  b1: (1, A)  w2: (1, 1, A)  b2: (1, 1, 1)
    returns ft (B, D), dist (B, L, 1)
    """
    B, L, _ = enc3.shape
    h = jnp.tanh(jnp.dot(enc2, w1, preferred_element_type=jnp.float32) + b1)
    h3 = h.reshape(B, L, -1)
    # context projection as VPU multiply + lane reduction (no N=1 matmul)
    att = jnp.sum(h3 * w2, axis=-1, keepdims=True) + b2            # (B, L, 1)
    pos = jax.lax.broadcasted_iota(jnp.int32, (B, L, 1), 1)
    valid = pos < lengths                                          # (B, L, 1)
    # max-subtraction is mathematically identical to the reference exp/softmax
    m = jnp.max(jnp.where(valid, att, -1e30), axis=1, keepdims=True)
    score = jnp.where(valid, jnp.exp(att - m), 0.0)
    # NOTE: a zero-length sequence gives 0/0 (NaN), same as the PyTorch ref.
    denom = jnp.sum(score, axis=1, keepdims=True)
    dist = score * pl.reciprocal(denom, approx=False)              # (B, L, 1)
    ft = jnp.sum(dist * enc3, axis=1)                              # (B, D)
    return ft, dist


# ---------------------------------------------------------------------------
# fused kernel: the whole HANModelCNN forward in one invocation
# ---------------------------------------------------------------------------

def _han_cnn_kernel(notes_ref, note_len_ref, stay_order_ref, stay_len_ref,
                    embed_ref,
                    wn_ref, bn_ref, w1n_ref, b1n_ref, w2n_ref, b2n_ref,
                    ws_ref, bs_ref, w1s_ref, b1s_ref, w2s_ref, b2s_ref,
                    fcw_ref, fcb_ref,
                    y_ref, attn_note_ref, attn_stay_ref,
                    pad_note_ref, pad_stay_ref):
    f32 = jnp.float32
    NB, LN, _ = notes_ref.shape          # num notes, padded note length
    V, E = embed_ref.shape               # vocab, embed dim
    DN = bn_ref.shape[-1]                # note_dim
    NS, LS, _ = stay_order_ref.shape     # num stays, padded stay length
    DS = bs_ref.shape[-1]                # stay_dim

    # --- embedding lookup as a one-hot MXU matmul (word_dropout = identity) --
    vocab_iota = jax.lax.broadcasted_iota(jnp.int32, (NB, LN, V), 2)
    onehot = (notes_ref[...] == vocab_iota).astype(f32)            # (NB, LN, V)
    emb2 = jnp.dot(onehot.reshape(NB * LN, V), embed_ref[...],
                   preferred_element_type=f32)                     # (NB*LN, E)

    # --- note level: stacked ConvEncoder + masked attention pooling ---------
    enc_note2 = _conv_encoder_same(emb2, NB, LN, E,
                                   wn_ref[...], bn_ref[...], pad_note_ref)
    enc_note3 = enc_note2.reshape(NB, LN, DN)
    ft_note, dist_n = _masked_attention_pool(
        enc_note2, enc_note3, note_len_ref[...],
        w1n_ref[...], b1n_ref[...], w2n_ref[...], b2n_ref[...])
    attn_note_ref[...] = dist_n

    # --- order_notes: per-stay gather of note features via one-hot matmul ---
    # stay_order index 0 is padding -> selects the implicit zero row.
    note_iota = jax.lax.broadcasted_iota(jnp.int32, (NS, LS, NB), 2)
    sel = (stay_order_ref[...] == note_iota + 1).astype(f32)       # (NS, LS, NB)
    stays2 = jnp.dot(sel.reshape(NS * LS, NB), ft_note,
                     preferred_element_type=f32)                   # (NS*LS, DN)

    # --- stay level: stacked ConvEncoder + masked attention pooling ---------
    enc_stay2 = _conv_encoder_same(stays2, NS, LS, DN,
                                   ws_ref[...], bs_ref[...], pad_stay_ref)
    enc_stay3 = enc_stay2.reshape(NS, LS, DS)
    ft_stay, dist_s = _masked_attention_pool(
        enc_stay2, enc_stay3, stay_len_ref[...],
        w1s_ref[...], b1s_ref[...], w2s_ref[...], b2s_ref[...])
    attn_stay_ref[...] = dist_s

    # --- final classifier ----------------------------------------------------
    y_ref[...] = jnp.dot(ft_stay, fcw_ref[...],
                         preferred_element_type=f32) + fcb_ref[...]


# ---------------------------------------------------------------------------
# parameter packing (raw per-conv params -> stacked / flattened kernel params)
# ---------------------------------------------------------------------------

def pack_params(raw):
    """Stack each ConvEncoder's filter banks into one (K_max*C_in, sum C_out)
    weight (smaller kernels zero-padded and centre aligned, matching
    nn.Conv1d(padding=k//2) for odd k), flattened for the im2col matmul."""
    def stack_convs(convs):
        c_in = convs[0][0].shape[1]
        k_max = max(w.shape[0] for w, _ in convs)
        ws, bs = [], []
        for w, b in convs:
            k = w.shape[0]
            assert k % 2 == 1 and k_max % 2 == 1, "stacking assumes odd kernels"
            off = (k_max - k) // 2
            wp = jnp.zeros((k_max, c_in, w.shape[2]), w.dtype).at[off:off + k].set(w)
            ws.append(wp)
            bs.append(b)
        w_stacked = jnp.concatenate(ws, axis=-1)        # (K_max, C_in, C_out_total)
        return w_stacked.reshape(k_max * c_in, -1), jnp.concatenate(bs)

    note_w, note_b = stack_convs(raw["note_conv"])
    stay_w, stay_b = stack_convs(raw["stay_conv"])
    return {
        "embed": raw["embed"],
        "note_w": note_w, "note_b": note_b,
        "stay_w": stay_w, "stay_b": stay_b,
        "note_attn": raw["note_attn"], "stay_attn": raw["stay_attn"],
        "fc_w": raw["fc_w"], "fc_b": raw["fc_b"],
    }


# ---------------------------------------------------------------------------
# wrapper: one pallas_call for the entire forward
# ---------------------------------------------------------------------------

@functools.partial(jax.jit, static_argnames=("Y",))
def han_model_cnn_forward(params, notes, note_lengths, stay_lengths, stay_order, Y):
    """notes:(NB,LN) int, note_lengths:(NB,), stay_order:(NS,LS) int (0 = pad),
    stay_lengths:(NS,). Returns (y_hat, (attn_note, attn_stay))."""
    NB, LN = notes.shape
    NS, LS = stay_order.shape
    V, E = params["embed"].shape
    DN = params["note_b"].shape[0]
    DS = params["stay_b"].shape[0]
    KN = params["note_w"].shape[0] // E
    KS = params["stay_w"].shape[0] // DN
    AN = params["note_attn"]["w1"].shape[1]
    AS = params["stay_attn"]["w1"].shape[1]
    Yd = params["fc_w"].shape[1]

    # Round sequence dims up to a sublane multiple so all in-kernel reshapes
    # are tile aligned. Padded note positions get token id -1 (embeds to exact
    # zeros via the one-hot, matching the reference's implicit 'same' zero
    # padding), padded stay slots get index 0 (zero row); both lie outside the
    # length masks, so results are unchanged.
    LNp = _round_up(LN, 8)
    LSp = _round_up(LS, 8)
    notes_p = jnp.pad(notes.astype(jnp.int32), ((0, 0), (0, LNp - LN)),
                      constant_values=-1)
    order_p = jnp.pad(stay_order.astype(jnp.int32), ((0, 0), (0, LSp - LS)),
                      constant_values=0)

    # Single no-grid pallas_call: every operand/intermediate is VMEM resident.
    # At realistic sizes, add a grid over notes with
    # dimension_semantics=("parallel",) (v7x: 2 TensorCores) and cast the
    # matmul operands to bf16 on v6e/v7x; unnecessary at this scale.
    y, dist_n, dist_s = pl.pallas_call(
        _han_cnn_kernel,
        out_shape=(jax.ShapeDtypeStruct((NS, Yd), jnp.float32),
                   jax.ShapeDtypeStruct((NB, LNp, 1), jnp.float32),
                   jax.ShapeDtypeStruct((NS, LSp, 1), jnp.float32)),
        scratch_shapes=(pltpu.VMEM((NB, LNp + KN - 1, E), jnp.float32),
                        pltpu.VMEM((NS, LSp + KS - 1, DN), jnp.float32)),
    )(
        notes_p.reshape(NB, LNp, 1),
        note_lengths.astype(jnp.int32).reshape(NB, 1, 1),
        order_p.reshape(NS, LSp, 1),
        stay_lengths.astype(jnp.int32).reshape(NS, 1, 1),
        params["embed"].astype(jnp.float32),
        params["note_w"], params["note_b"].reshape(1, DN),
        params["note_attn"]["w1"], params["note_attn"]["b1"].reshape(1, AN),
        params["note_attn"]["w2"].reshape(1, 1, AN),
        params["note_attn"]["b2"].reshape(1, 1, 1),
        params["stay_w"], params["stay_b"].reshape(1, DS),
        params["stay_attn"]["w1"], params["stay_attn"]["b1"].reshape(1, AS),
        params["stay_attn"]["w2"].reshape(1, 1, AS),
        params["stay_attn"]["b2"].reshape(1, 1, 1),
        params["fc_w"], params["fc_b"].reshape(1, Yd),
    )

    attn_note = dist_n[:, :LN, 0]
    attn_stay = dist_s[:, :LS, 0]
    if Y == 1:
        y = jnp.maximum(y, 0.0).squeeze()
    return y, (attn_note, attn_stay)


# ---------------------------------------------------------------------------
# pure-JAX reference (mirrors the PyTorch forward, for correctness checking)
# ---------------------------------------------------------------------------

def reference_forward(raw, notes, note_lengths, stay_lengths, stay_order, Y):
    P = jax.lax.Precision.HIGHEST
    emb = jnp.take(raw["embed"], notes, axis=0)                    # (NB, LN, E)

    def conv_same(x, w, b):                                        # w (K, Cin, Cout)
        K = w.shape[0]
        pad = K // 2
        L = x.shape[1]
        xp = jnp.pad(x, ((0, 0), (pad, pad), (0, 0)))
        out = sum(jnp.einsum("blc,cd->bld", xp[:, k:k + L, :], w[k], precision=P)
                  for k in range(K))
        return out + b

    def conv_encoder(x, convs):
        return jnp.concatenate([conv_same(x, w, b) for (w, b) in convs], axis=-1)

    def attention(enc, lengths, p):
        h = jnp.tanh(jnp.einsum("bld,da->bla", enc, p["w1"], precision=P) + p["b1"])
        att = jnp.einsum("bla,a->bl", h, p["w2"][:, 0], precision=P) + p["b2"][0]
        L = enc.shape[1]
        mask = (jnp.arange(L)[None, :] < lengths[:, None]).astype(enc.dtype)
        score = jnp.exp(att) * mask
        dist = score / jnp.sum(score, axis=-1, keepdims=True)
        ft = jnp.einsum("bl,bld->bd", dist, enc, precision=P)
        return ft, dist

    enc_note = conv_encoder(emb, raw["note_conv"])
    ft_note, attn_note = attention(enc_note, note_lengths, raw["note_attn"])
    rep = jnp.concatenate(
        [jnp.zeros((1, ft_note.shape[-1]), ft_note.dtype), ft_note], axis=0)
    stays = jnp.take(rep, stay_order.reshape(-1), axis=0).reshape(
        stay_order.shape[0], stay_order.shape[1], -1)
    enc_stay = conv_encoder(stays, raw["stay_conv"])
    ft_stay, attn_stay = attention(enc_stay, stay_lengths, raw["stay_attn"])
    y = jnp.dot(ft_stay, raw["fc_w"], precision=P) + raw["fc_b"]
    if Y == 1:
        y = jnp.maximum(y, 0.0).squeeze()
    return y, (attn_note, attn_stay)


# ---------------------------------------------------------------------------
# deterministic parameters + run
# ---------------------------------------------------------------------------

if __name__ == "__main__":
    # Token_CNN_HAN(filter_num=8, filter_sizes='3,5'), Y=5
    Y = 5
    filter_num = 8
    vocab_size = 50
    embed_dim = 32
    note_dim = 2 * filter_num          # len('3,5'.split(',')) * filter_num
    stay_dim = 2 * filter_num

    num_notes, note_len = 6, 16
    num_stays, stay_len = 2, 4

    key = jax.random.PRNGKey(0)
    ks = jax.random.split(key, 16)

    def xavier(k, shape):
        lim = (6.0 / (shape[0] + shape[1])) ** 0.5
        return jax.random.uniform(k, shape, jnp.float32, -lim, lim)

    raw = {
        "embed": 0.1 * jax.random.normal(ks[0], (vocab_size, embed_dim), jnp.float32),
        # Conv weights stored as (K, C_in, C_out); biases (C_out,)
        "note_conv": [
            (0.05 * jax.random.normal(ks[1], (3, embed_dim, filter_num), jnp.float32),
             0.01 * jax.random.normal(ks[2], (filter_num,), jnp.float32)),
            (0.05 * jax.random.normal(ks[3], (5, embed_dim, filter_num), jnp.float32),
             0.01 * jax.random.normal(ks[4], (filter_num,), jnp.float32)),
        ],
        "stay_conv": [
            (0.05 * jax.random.normal(ks[5], (3, note_dim, filter_num), jnp.float32),
             0.01 * jax.random.normal(ks[6], (filter_num,), jnp.float32)),
            (0.05 * jax.random.normal(ks[7], (5, note_dim, filter_num), jnp.float32),
             0.01 * jax.random.normal(ks[8], (filter_num,), jnp.float32)),
        ],
        "note_attn": {"w1": xavier(ks[9], (note_dim, note_dim)),
                      "b1": 0.01 * jax.random.normal(ks[10], (note_dim,), jnp.float32),
                      "w2": xavier(ks[11], (note_dim, 1)),
                      "b2": jnp.zeros((1,), jnp.float32)},
        "stay_attn": {"w1": xavier(ks[12], (stay_dim, stay_dim)),
                      "b1": 0.01 * jax.random.normal(ks[13], (stay_dim,), jnp.float32),
                      "w2": xavier(ks[14], (stay_dim, 1)),
                      "b2": jnp.zeros((1,), jnp.float32)},
        "fc_w": 0.1 * jax.random.normal(ks[15], (stay_dim, Y), jnp.float32),
        "fc_b": 0.01 * jnp.ones((Y,), jnp.float32),
    }
    params = pack_params(raw)

    # Inputs. max(lengths) equals the padded length (required by the reference
    # masked-softmax broadcast) and there are no zero-length sequences.
    notes = jax.random.randint(jax.random.PRNGKey(1), (num_notes, note_len), 1,
                               vocab_size, dtype=jnp.int32)
    note_lengths = jnp.array([16, 12, 9, 16, 7, 5], jnp.int32)
    stay_order = jnp.array([[1, 2, 3, 4], [5, 6, 0, 0]], jnp.int32)   # 0 == pad
    stay_lengths = jnp.array([4, 2], jnp.int32)

    y_hat, (attn_note, attn_stay) = han_model_cnn_forward(
        params, notes, note_lengths, stay_lengths, stay_order, Y=Y)
    jax.block_until_ready(y_hat)

    assert y_hat.shape == (num_stays, Y)
    assert attn_note.shape == (num_notes, note_len)
    assert attn_stay.shape == (num_stays, stay_len)

    # Numerical check against a pure-JAX reference of the PyTorch forward
    # (tolerance covers MXU f32 accumulation-order differences).
    y_ref, (an_ref, as_ref) = reference_forward(
        raw, notes, note_lengths, stay_lengths, stay_order, Y)
    for got, want in ((y_hat, y_ref), (attn_note, an_ref), (attn_stay, as_ref)):
        err = float(jnp.max(jnp.abs(got - want)))
        assert err < 5e-3, f"mismatch vs reference: max abs err {err}"

    print("KERNEL_OK")
</pallas_src>

<mosaic_0001>
module attributes {stable_mosaic.version = 11 : i64} {
  func.func @_han_cnn_kernel(%arg0: memref<6x16x1xi32, #tpu.memory_space<vmem>>, %arg1: memref<6x1x1xi32, #tpu.memory_space<vmem>>, %arg2: memref<2x8x1xi32, #tpu.memory_space<vmem>>, %arg3: memref<2x1x1xi32, #tpu.memory_space<vmem>>, %arg4: memref<50x32xf32, #tpu.memory_space<vmem>>, %arg5: memref<160x16xf32, #tpu.memory_space<vmem>>, %arg6: memref<1x16xf32, #tpu.memory_space<vmem>>, %arg7: memref<16x16xf32, #tpu.memory_space<vmem>>, %arg8: memref<1x16xf32, #tpu.memory_space<vmem>>, %arg9: memref<1x1x16xf32, #tpu.memory_space<vmem>>, %arg10: memref<1x1x1xf32, #tpu.memory_space<vmem>>, %arg11: memref<80x16xf32, #tpu.memory_space<vmem>>, %arg12: memref<1x16xf32, #tpu.memory_space<vmem>>, %arg13: memref<16x16xf32, #tpu.memory_space<vmem>>, %arg14: memref<1x16xf32, #tpu.memory_space<vmem>>, %arg15: memref<1x1x16xf32, #tpu.memory_space<vmem>>, %arg16: memref<1x1x1xf32, #tpu.memory_space<vmem>>, %arg17: memref<16x5xf32, #tpu.memory_space<vmem>>, %arg18: memref<1x5xf32, #tpu.memory_space<vmem>>, %arg19: memref<2x5xf32, #tpu.memory_space<vmem>>, %arg20: memref<6x16x1xf32, #tpu.memory_space<vmem>>, %arg21: memref<2x8x1xf32, #tpu.memory_space<vmem>>, %arg22: memref<6x20x32xf32, #tpu.memory_space<vmem>>, %arg23: memref<2x12x16xf32, #tpu.memory_space<vmem>>) attributes {dimension_semantics = [], scalar_prefetch = 0 : i64, scratch_operands = 2 : i64, tpu.core_type = #tpu.core_type<tc>} {
    %0 = tpu.iota {dimensions = array<i32: 2>} : vector<6x16x50xi32>
    %c0 = arith.constant 0 : index
    %c0_0 = arith.constant 0 : index
    %c0_1 = arith.constant 0 : index
    %1 = vector.load %arg0[%c0, %c0_0, %c0_1] : memref<6x16x1xi32, #tpu.memory_space<vmem>>, vector<6x16x1xi32>
    %2 = vector.broadcast %1 : vector<6x16x1xi32> to vector<6x16x50xi32>
    %3 = arith.cmpi eq, %2, %0 : vector<6x16x50xi32>
    %4 = arith.extui %3 : vector<6x16x50xi1> to vector<6x16x50xi32>
    %5 = arith.sitofp %4 : vector<6x16x50xi32> to vector<6x16x50xf32>
    %6 = vector.shape_cast %5 : vector<6x16x50xf32> to vector<96x50xf32>
    %c0_2 = arith.constant 0 : index
    %c0_3 = arith.constant 0 : index
    %7 = vector.load %arg4[%c0_2, %c0_3] : memref<50x32xf32, #tpu.memory_space<vmem>>, vector<50x32xf32>
    %cst = arith.constant dense<0.000000e+00> : vector<96x32xf32>
    %8 = tpu.matmul %6, %7, %cst {dimension_numbers = #tpu.dot_dimension_numbers<[1], [0], [0], [1], [0, 0, 1, 1], [], []>} : vector<96x50xf32>, vector<50x32xf32>, vector<96x32xf32> -> vector<96x32xf32>
    %c0_4 = arith.constant 0 : index
    %c0_5 = arith.constant 0 : index
    %9 = vector.load %arg5[%c0_4, %c0_5] : memref<160x16xf32, #tpu.memory_space<vmem>>, vector<160x16xf32>
    %c0_6 = arith.constant 0 : index
    %c0_7 = arith.constant 0 : index
    %10 = vector.load %arg6[%c0_6, %c0_7] : memref<1x16xf32, #tpu.memory_space<vmem>>, vector<1x16xf32>
    %cst_8 = arith.constant 0.000000e+00 : f32
    %11 = vector.broadcast %cst_8 : f32 to vector<6x2x32xf32>
    %c0_9 = arith.constant 0 : index
    %c0_10 = arith.constant 0 : index
    %c0_11 = arith.constant 0 : index
    %12 = vector.load %arg22[%c0_9, %c0_10, %c0_11] : memref<6x20x32xf32, #tpu.memory_space<vmem>>, vector<6x2x32xf32>
    tpu.vector_store %arg22[%c0_9, %c0_10, %c0_11], %11 {strides = array<i32>} : memref<6x20x32xf32, #tpu.memory_space<vmem>>, vector<6x2x32xf32>,
    %cst_12 = arith.constant 0.000000e+00 : f32
    %13 = vector.broadcast %cst_12 : f32 to vector<6x2x32xf32>
    %c0_13 = arith.constant 0 : index
    %c18 = arith.constant 18 : index
    %c0_14 = arith.constant 0 : index
    %14 = vector.load %arg22[%c0_13, %c18, %c0_14] : memref<6x20x32xf32, #tpu.memory_space<vmem>>, vector<6x2x32xf32>
    tpu.vector_store %arg22[%c0_13, %c18, %c0_14], %13 {strides = array<i32>} : memref<6x20x32xf32, #tpu.memory_space<vmem>>, vector<6x2x32xf32>,
    %15 = vector.shape_cast %8 : vector<96x32xf32> to vector<6x16x32xf32>
    %c0_15 = arith.constant 0 : index
    %c2 = arith.constant 2 : index
    %c0_16 = arith.constant 0 : index
    %16 = vector.load %arg22[%c0_15, %c2, %c0_16] : memref<6x20x32xf32, #tpu.memory_space<vmem>>, vector<6x16x32xf32>
    tpu.vector_store %arg22[%c0_15, %c2, %c0_16], %15 {strides = array<i32>} : memref<6x20x32xf32, #tpu.memory_space<vmem>>, vector<6x16x32xf32>,
    %c0_17 = arith.constant 0 : index
    %c0_18 = arith.constant 0 : index
    %c0_19 = arith.constant 0 : index
    %17 = vector.load %arg22[%c0_17, %c0_18, %c0_19] : memref<6x20x32xf32, #tpu.memory_space<vmem>>, vector<6x16x32xf32>
    %c0_20 = arith.constant 0 : index
    %c1 = arith.constant 1 : index
    %c0_21 = arith.constant 0 : index
    %18 = vector.load %arg22[%c0_20, %c1, %c0_21] : memref<6x20x32xf32, #tpu.memory_space<vmem>>, vector<6x16x32xf32>
    %c0_22 = arith.constant 0 : index
    %c2_23 = arith.constant 2 : index
    %c0_24 = arith.constant 0 : index
    %19 = vector.load %arg22[%c0_22, %c2_23, %c0_24] : memref<6x20x32xf32, #tpu.memory_space<vmem>>, vector<6x16x32xf32>
    %c0_25 = arith.constant 0 : index
    %c3 = arith.constant 3 : index
    %c0_26 = arith.constant 0 : index
    %20 = vector.load %arg22[%c0_25, %c3, %c0_26] : memref<6x20x32xf32, #tpu.memory_space<vmem>>, vector<6x16x32xf32>
    %c0_27 = arith.constant 0 : index
    %c4 = arith.constant 4 : index
    %c0_28 = arith.constant 0 : index
    %21 = vector.load %arg22[%c0_27, %c4, %c0_28] : memref<6x20x32xf32, #tpu.memory_space<vmem>>, vector<6x16x32xf32>
    %22 = tpu.concatenate %17, %18, %19, %20, %21 in 2 : vector<6x16x32xf32>, vector<6x16x32xf32>, vector<6x16x32xf32>, vector<6x16x32xf32>, vector<6x16x32xf32> -> vector<6x16x160xf32>
    %23 = vector.shape_cast %22 : vector<6x16x160xf32> to vector<96x160xf32>
    %cst_29 = arith.constant dense<0.000000e+00> : vector<96x16xf32>
    %24 = tpu.matmul %23, %9, %cst_29 {dimension_numbers = #tpu.dot_dimension_numbers<[1], [0], [0], [1], [0, 0, 1, 1], [], []>} : vector<96x160xf32>, vector<160x16xf32>, vector<96x16xf32> -> vector<96x16xf32>
    %25 = vector.broadcast %10 : vector<1x16xf32> to vector<96x16xf32>
    %26 = arith.addf %24, %25 : vector<96x16xf32>
    %27 = vector.shape_cast %26 : vector<96x16xf32> to vector<6x16x16xf32>
    %c0_30 = arith.constant 0 : index
    %c0_31 = arith.constant 0 : index
    %c0_32 = arith.constant 0 : index
    %28 = vector.load %arg1[%c0_30, %c0_31, %c0_32] : memref<6x1x1xi32, #tpu.memory_space<vmem>>, vector<6x1x1xi32>
    %c0_33 = arith.constant 0 : index
    %c0_34 = arith.constant 0 : index
    %29 = vector.load %arg7[%c0_33, %c0_34] : memref<16x16xf32, #tpu.memory_space<vmem>>, vector<16x16xf32>
    %c0_35 = arith.constant 0 : index
    %c0_36 = arith.constant 0 : index
    %30 = vector.load %arg8[%c0_35, %c0_36] : memref<1x16xf32, #tpu.memory_space<vmem>>, vector<1x16xf32>
    %c0_37 = arith.constant 0 : index
    %c0_38 = arith.constant 0 : index
    %c0_39 = arith.constant 0 : index
    %31 = vector.load %arg9[%c0_37, %c0_38, %c0_39] : memref<1x1x16xf32, #tpu.memory_space<vmem>>, vector<1x1x16xf32>
    %c0_40 = arith.constant 0 : index
    %c0_41 = arith.constant 0 : index
    %c0_42 = arith.constant 0 : index
    %32 = vector.load %arg10[%c0_40, %c0_41, %c0_42] : memref<1x1x1xf32, #tpu.memory_space<vmem>>, vector<1x1x1xf32>
    %cst_43 = arith.constant dense<0.000000e+00> : vector<96x16xf32>
    %33 = tpu.matmul %26, %29, %cst_43 {dimension_numbers = #tpu.dot_dimension_numbers<[1], [0], [0], [1], [0, 0, 1, 1], [], []>} : vector<96x16xf32>, vector<16x16xf32>, vector<96x16xf32> -> vector<96x16xf32>
    %34 = vector.broadcast %30 : vector<1x16xf32> to vector<96x16xf32>
    %35 = arith.addf %33, %34 : vector<96x16xf32>
    %36 = math.tanh %35 : vector<96x16xf32>
    %37 = vector.shape_cast %36 : vector<96x16xf32> to vector<6x16x16xf32>
    %38 = vector.broadcast %31 : vector<1x1x16xf32> to vector<6x16x16xf32>
    %39 = arith.mulf %37, %38 : vector<6x16x16xf32>
    %cst_44 = arith.constant dense<0.000000e+00> : vector<6x16xf32>
    %40 = vector.multi_reduction <add>, %39, %cst_44 [2] : vector<6x16x16xf32> to vector<6x16xf32>
    %41 = vector.shape_cast %40 : vector<6x16xf32> to vector<6x16x1xf32>
    %42 = vector.broadcast %32 : vector<1x1x1xf32> to vector<6x16x1xf32>
    %43 = arith.addf %41, %42 : vector<6x16x1xf32>
    %44 = tpu.iota {dimensions = array<i32: 1>} : vector<6x16x1xi32>
    %45 = vector.broadcast %28 : vector<6x1x1xi32> to vector<6x16x1xi32>
    %46 = arith.cmpi slt, %44, %45 : vector<6x16x1xi32>
    %cst_45 = arith.constant -1.000000e+30 : f32
    %47 = vector.broadcast %cst_45 : f32 to vector<6x16x1xf32>
    %48 = arith.select %46, %43, %47 : vector<6x16x1xi1>, vector<6x16x1xf32>
    %cst_46 = arith.constant dense<0xFF800000> : vector<6x1xf32>
    %49 = vector.multi_reduction <maximumf>, %48, %cst_46 [1] : vector<6x16x1xf32> to vector<6x1xf32>
    %50 = vector.shape_cast %49 : vector<6x1xf32> to vector<6x1x1xf32>
    %51 = vector.broadcast %50 : vector<6x1x1xf32> to vector<6x16x1xf32>
    %52 = arith.subf %43, %51 : vector<6x16x1xf32>
    %53 = math.exp %52 : vector<6x16x1xf32>
    %cst_47 = arith.constant 0.000000e+00 : f32
    %54 = vector.broadcast %cst_47 : f32 to vector<6x16x1xf32>
    %55 = arith.select %46, %53, %54 : vector<6x16x1xi1>, vector<6x16x1xf32>
    %cst_48 = arith.constant dense<0.000000e+00> : vector<6x1xf32>
    %56 = vector.multi_reduction <add>, %55, %cst_48 [1] : vector<6x16x1xf32> to vector<6x1xf32>
    %57 = vector.shape_cast %56 : vector<6x1xf32> to vector<6x1x1xf32>
    %58 = tpu.reciprocal %57 : vector<6x1x1xf32> -> vector<6x1x1xf32>
    %59 = vector.broadcast %58 : vector<6x1x1xf32> to vector<6x16x1xf32>
    %60 = arith.mulf %55, %59 : vector<6x16x1xf32>
    %61 = vector.broadcast %60 : vector<6x16x1xf32> to vector<6x16x16xf32>
    %62 = arith.mulf %61, %27 : vector<6x16x16xf32>
    %cst_49 = arith.constant dense<0.000000e+00> : vector<6x16xf32>
    %63 = vector.multi_reduction <add>, %62, %cst_49 [1] : vector<6x16x16xf32> to vector<6x16xf32>
    %c0_50 = arith.constant 0 : index
    %c0_51 = arith.constant 0 : index
    %c0_52 = arith.constant 0 : index
    %64 = vector.load %arg20[%c0_50, %c0_51, %c0_52] : memref<6x16x1xf32, #tpu.memory_space<vmem>>, vector<6x16x1xf32>
    tpu.vector_store %arg20[%c0_50, %c0_51, %c0_52], %60 {strides = array<i32>} : memref<6x16x1xf32, #tpu.memory_space<vmem>>, vector<6x16x1xf32>,
    %65 = tpu.iota {dimensions = array<i32: 2>} : vector<2x8x6xi32>
    %c0_53 = arith.constant 0 : index
    %c0_54 = arith.constant 0 : index
    %c0_55 = arith.constant 0 : index
    %66 = vector.load %arg2[%c0_53, %c0_54, %c0_55] : memref<2x8x1xi32, #tpu.memory_space<vmem>>, vector<2x8x1xi32>
    %c1_i32 = arith.constant 1 : i32
    %67 = vector.broadcast %c1_i32 : i32 to vector<2x8x6xi32>
    %68 = arith.addi %65, %67 : vector<2x8x6xi32>
    %69 = vector.broadcast %66 : vector<2x8x1xi32> to vector<2x8x6xi32>
    %70 = arith.cmpi eq, %69, %68 : vector<2x8x6xi32>
    %71 = arith.extui %70 : vector<2x8x6xi1> to vector<2x8x6xi32>
    %72 = arith.sitofp %71 : vector<2x8x6xi32> to vector<2x8x6xf32>
    %73 = vector.shape_cast %72 : vector<2x8x6xf32> to vector<16x6xf32>
    %cst_56 = arith.constant dense<0.000000e+00> : vector<16x16xf32>
    %74 = tpu.matmul %73, %63, %cst_56 {dimension_numbers = #tpu.dot_dimension_numbers<[1], [0], [0], [1], [0, 0, 1, 1], [], []>} : vector<16x6xf32>, vector<6x16xf32>, vector<16x16xf32> -> vector<16x16xf32>
    %c0_57 = arith.constant 0 : index
    %c0_58 = arith.constant 0 : index
    %75 = vector.load %arg11[%c0_57, %c0_58] : memref<80x16xf32, #tpu.memory_space<vmem>>, vector<80x16xf32>
    %c0_59 = arith.constant 0 : index
    %c0_60 = arith.constant 0 : index
    %76 = vector.load %arg12[%c0_59, %c0_60] : memref<1x16xf32, #tpu.memory_space<vmem>>, vector<1x16xf32>
    %cst_61 = arith.constant 0.000000e+00 : f32
    %77 = vector.broadcast %cst_61 : f32 to vector<2x2x16xf32>
    %c0_62 = arith.constant 0 : index
    %c0_63 = arith.constant 0 : index
    %c0_64 = arith.constant 0 : index
    %78 = vector.load %arg23[%c0_62, %c0_63, %c0_64] : memref<2x12x16xf32, #tpu.memory_space<vmem>>, vector<2x2x16xf32>
    tpu.vector_store %arg23[%c0_62, %c0_63, %c0_64], %77 {strides = array<i32>} : memref<2x12x16xf32, #tpu.memory_space<vmem>>, vector<2x2x16xf32>,
    %cst_65 = arith.constant 0.000000e+00 : f32
    %79 = vector.broadcast %cst_65 : f32 to vector<2x2x16xf32>
    %c0_66 = arith.constant 0 : index
    %c10 = arith.constant 10 : index
    %c0_67 = arith.constant 0 : index
    %80 = vector.load %arg23[%c0_66, %c10, %c0_67] : memref<2x12x16xf32, #tpu.memory_space<vmem>>, vector<2x2x16xf32>
    tpu.vector_store %arg23[%c0_66, %c10, %c0_67], %79 {strides = array<i32>} : memref<2x12x16xf32, #tpu.memory_space<vmem>>, vector<2x2x16xf32>,
    %81 = vector.shape_cast %74 : vector<16x16xf32> to vector<2x8x16xf32>
    %c0_68 = arith.constant 0 : index
    %c2_69 = arith.constant 2 : index
    %c0_70 = arith.constant 0 : index
    %82 = vector.load %arg23[%c0_68, %c2_69, %c0_70] : memref<2x12x16xf32, #tpu.memory_space<vmem>>, vector<2x8x16xf32>
    tpu.vector_store %arg23[%c0_68, %c2_69, %c0_70], %81 {strides = array<i32>} : memref<2x12x16xf32, #tpu.memory_space<vmem>>, vector<2x8x16xf32>,
    %c0_71 = arith.constant 0 : index
    %c0_72 = arith.constant 0 : index
    %c0_73 = arith.constant 0 : index
    %83 = vector.load %arg23[%c0_71, %c0_72, %c0_73] : memref<2x12x16xf32, #tpu.memory_space<vmem>>, vector<2x8x16xf32>
    %c0_74 = arith.constant 0 : index
    %c1_75 = arith.constant 1 : index
    %c0_76 = arith.constant 0 : index
    %84 = vector.load %arg23[%c0_74, %c1_75, %c0_76] : memref<2x12x16xf32, #tpu.memory_space<vmem>>, vector<2x8x16xf32>
    %c0_77 = arith.constant 0 : index
    %c2_78 = arith.constant 2 : index
    %c0_79 = arith.constant 0 : index
    %85 = vector.load %arg23[%c0_77, %c2_78, %c0_79] : memref<2x12x16xf32, #tpu.memory_space<vmem>>, vector<2x8x16xf32>
    %c0_80 = arith.constant 0 : index
    %c3_81 = arith.constant 3 : index
    %c0_82 = arith.constant 0 : index
    %86 = vector.load %arg23[%c0_80, %c3_81, %c0_82] : memref<2x12x16xf32, #tpu.memory_space<vmem>>, vector<2x8x16xf32>
    %c0_83 = arith.constant 0 : index
    %c4_84 = arith.constant 4 : index
    %c0_85 = arith.constant 0 : index
    %87 = vector.load %arg23[%c0_83, %c4_84, %c0_85] : memref<2x12x16xf32, #tpu.memory_space<vmem>>, vector<2x8x16xf32>
    %88 = tpu.concatenate %83, %84, %85, %86, %87 in 2 : vector<2x8x16xf32>, vector<2x8x16xf32>, vector<2x8x16xf32>, vector<2x8x16xf32>, vector<2x8x16xf32> -> vector<2x8x80xf32>
    %89 = vector.shape_cast %88 : vector<2x8x80xf32> to vector<16x80xf32>
    %cst_86 = arith.constant dense<0.000000e+00> : vector<16x16xf32>
    %90 = tpu.matmul %89, %75, %cst_86 {dimension_numbers = #tpu.dot_dimension_numbers<[1], [0], [0], [1], [0, 0, 1, 1], [], []>} : vector<16x80xf32>, vector<80x16xf32>, vector<16x16xf32> -> vector<16x16xf32>
    %91 = vector.broadcast %76 : vector<1x16xf32> to vector<16x16xf32>
    %92 = arith.addf %90, %91 : vector<16x16xf32>
    %93 = vector.shape_cast %92 : vector<16x16xf32> to vector<2x8x16xf32>
    %c0_87 = arith.constant 0 : index
    %c0_88 = arith.constant 0 : index
    %c0_89 = arith.constant 0 : index
    %94 = vector.load %arg3[%c0_87, %c0_88, %c0_89] : memref<2x1x1xi32, #tpu.memory_space<vmem>>, vector<2x1x1xi32>
    %c0_90 = arith.constant 0 : index
    %c0_91 = arith.constant 0 : index
    %95 = vector.load %arg13[%c0_90, %c0_91] : memref<16x16xf32, #tpu.memory_space<vmem>>, vector<16x16xf32>
    %c0_92 = arith.constant 0 : index
    %c0_93 = arith.constant 0 : index
    %96 = vector.load %arg14[%c0_92, %c0_93] : memref<1x16xf32, #tpu.memory_space<vmem>>, vector<1x16xf32>
    %c0_94 = arith.constant 0 : index
    %c0_95 = arith.constant 0 : index
    %c0_96 = arith.constant 0 : index
    %97 = vector.load %arg15[%c0_94, %c0_95, %c0_96] : memref<1x1x16xf32, #tpu.memory_space<vmem>>, vector<1x1x16xf32>
    %c0_97 = arith.constant 0 : index
    %c0_98 = arith.constant 0 : index
    %c0_99 = arith.constant 0 : index
    %98 = vector.load %arg16[%c0_97, %c0_98, %c0_99] : memref<1x1x1xf32, #tpu.memory_space<vmem>>, vector<1x1x1xf32>
    %cst_100 = arith.constant dense<0.000000e+00> : vector<16x16xf32>
    %99 = tpu.matmul %92, %95, %cst_100 {dimension_numbers = #tpu.dot_dimension_numbers<[1], [0], [0], [1], [0, 0, 1, 1], [], []>} : vector<16x16xf32>, vector<16x16xf32>, vector<16x16xf32> -> vector<16x16xf32>
    %100 = vector.broadcast %96 : vector<1x16xf32> to vector<16x16xf32>
    %101 = arith.addf %99, %100 : vector<16x16xf32>
    %102 = math.tanh %101 : vector<16x16xf32>
    %103 = vector.shape_cast %102 : vector<16x16xf32> to vector<2x8x16xf32>
    %104 = vector.broadcast %97 : vector<1x1x16xf32> to vector<2x8x16xf32>
    %105 = arith.mulf %103, %104 : vector<2x8x16xf32>
    %cst_101 = arith.constant dense<0.000000e+00> : vector<2x8xf32>
    %106 = vector.multi_reduction <add>, %105, %cst_101 [2] : vector<2x8x16xf32> to vector<2x8xf32>
    %107 = vector.shape_cast %106 : vector<2x8xf32> to vector<2x8x1xf32>
    %108 = vector.broadcast %98 : vector<1x1x1xf32> to vector<2x8x1xf32>
    %109 = arith.addf %107, %108 : vector<2x8x1xf32>
    %110 = tpu.iota {dimensions = array<i32: 1>} : vector<2x8x1xi32>
    %111 = vector.broadcast %94 : vector<2x1x1xi32> to vector<2x8x1xi32>
    %112 = arith.cmpi slt, %110, %111 : vector<2x8x1xi32>
    %cst_102 = arith.constant -1.000000e+30 : f32
    %113 = vector.broadcast %cst_102 : f32 to vector<2x8x1xf32>
    %114 = arith.select %112, %109, %113 : vector<2x8x1xi1>, vector<2x8x1xf32>
    %cst_103 = arith.constant dense<0xFF800000> : vector<2x1xf32>
    %115 = vector.multi_reduction <maximumf>, %114, %cst_103 [1] : vector<2x8x1xf32> to vector<2x1xf32>
    %116 = vector.shape_cast %115 : vector<2x1xf32> to vector<2x1x1xf32>
    %117 = vector.broadcast %116 : vector<2x1x1xf32> to vector<2x8x1xf32>
    %118 = arith.subf %109, %117 : vector<2x8x1xf32>
    %119 = math.exp %118 : vector<2x8x1xf32>
    %cst_104 = arith.constant 0.000000e+00 : f32
    %120 = vector.broadcast %cst_104 : f32 to vector<2x8x1xf32>
    %121 = arith.select %112, %119, %120 : vector<2x8x1xi1>, vector<2x8x1xf32>
    %cst_105 = arith.constant dense<0.000000e+00> : vector<2x1xf32>
    %122 = vector.multi_reduction <add>, %121, %cst_105 [1] : vector<2x8x1xf32> to vector<2x1xf32>
    %123 = vector.shape_cast %122 : vector<2x1xf32> to vector<2x1x1xf32>
    %124 = tpu.reciprocal %123 : vector<2x1x1xf32> -> vector<2x1x1xf32>
    %125 = vector.broadcast %124 : vector<2x1x1xf32> to vector<2x8x1xf32>
    %126 = arith.mulf %121, %125 : vector<2x8x1xf32>
    %127 = vector.broadcast %126 : vector<2x8x1xf32> to vector<2x8x16xf32>
    %128 = arith.mulf %127, %93 : vector<2x8x16xf32>
    %cst_106 = arith.constant dense<0.000000e+00> : vector<2x16xf32>
    %129 = vector.multi_reduction <add>, %128, %cst_106 [1] : vector<2x8x16xf32> to vector<2x16xf32>
    %c0_107 = arith.constant 0 : index
    %c0_108 = arith.constant 0 : index
    %c0_109 = arith.constant 0 : index
    %130 = vector.load %arg21[%c0_107, %c0_108, %c0_109] : memref<2x8x1xf32, #tpu.memory_space<vmem>>, vector<2x8x1xf32>
    tpu.vector_store %arg21[%c0_107, %c0_108, %c0_109], %126 {strides = array<i32>} : memref<2x8x1xf32, #tpu.memory_space<vmem>>, vector<2x8x1xf32>,
    %c0_110 = arith.constant 0 : index
    %c0_111 = arith.constant 0 : index
    %131 = vector.load %arg17[%c0_110, %c0_111] : memref<16x5xf32, #tpu.memory_space<vmem>>, vector<16x5xf32>
    %cst_112 = arith.constant dense<0.000000e+00> : vector<2x5xf32>
    %132 = tpu.matmul %129, %131, %cst_112 {dimension_numbers = #tpu.dot_dimension_numbers<[1], [0], [0], [1], [0, 0, 1, 1], [], []>} : vector<2x16xf32>, vector<16x5xf32>, vector<2x5xf32> -> vector<2x5xf32>
    %c0_113 = arith.constant 0 : index
    %c0_114 = arith.constant 0 : index
    %133 = vector.load %arg18[%c0_113, %c0_114] : memref<1x5xf32, #tpu.memory_space<vmem>>, vector<1x5xf32>
    %134 = vector.broadcast %133 : vector<1x5xf32> to vector<2x5xf32>
    %135 = arith.addf %132, %134 : vector<2x5xf32>
    %c0_115 = arith.constant 0 : index
    %c0_116 = arith.constant 0 : index
    %136 = vector.load %arg19[%c0_115, %c0_116] : memref<2x5xf32, #tpu.memory_space<vmem>>, vector<2x5xf32>
    tpu.vector_store %arg19[%c0_115, %c0_116], %135 {strides = array<i32>} : memref<2x5xf32, #tpu.memory_space<vmem>>, vector<2x5xf32>,
    return
  }
}

</mosaic_0001>

<llo_original>
// kernel: han_model_cnn_forward.1
$region0: #{han_model_cnn_forward.1}
  #allocation0 [shape = 'u32[]', space=smem, size = 0x4, offset = 0x4, fixed_abs, tag = 'smem constant byte address 0x4 - core index']
  #allocation1 [shape = 'u32[144,128]{1,0:T(1,128)}', space=vmem, size = 0x12000, scoped, tag = 'internal scratch']
  #allocation2 [shape = 'f32[6,20,32]{2,1,0:T(8,128)}', space=vmem, size = 0x12000, scoped, tag = 'scratch operand']
  #allocation3 [shape = 'f32[2,12,16]{2,1,0:T(8,128)}', space=vmem, size = 0x4000, scoped, tag = 'scratch operand']
  #allocation4 [shape = 'f32[1,1,1]{2,1,0:T(1,128)S(1)}', space=vmem, size = 0x200, scoped, tag = 'scoped memory for han_model_cnn_forward.1']
  #allocation5 [shape = 'f32[1,1,1]{2,1,0:T(1,128)S(1)}', space=vmem, size = 0x200, scoped, tag = 'scoped memory for han_model_cnn_forward.1']
  %s0 = inlined_call_operand.vmem [shape: s32[6,16,1], index: 0, kind: input, shape index: {}]
  %s1 = inlined_call_operand.vmem [shape: s32[6,1,1], index: 1, kind: input, shape index: {}]
  %s2 = inlined_call_operand.vmem [shape: s32[2,8,1], index: 2, kind: input, shape index: {}]
  %s3 = inlined_call_operand.vmem [shape: s32[2,1,1], index: 3, kind: input, shape index: {}]
  %s4 = inlined_call_operand.vmem [shape: f32[50,32], index: 4, kind: input, shape index: {}]
  %s5 = inlined_call_operand.vmem [shape: f32[160,16], index: 5, kind: input, shape index: {}]
  %s6 = inlined_call_operand.vmem [shape: f32[1,16], index: 6, kind: input, shape index: {}]
  %s7 = inlined_call_operand.vmem [shape: f32[16,16], index: 7, kind: input, shape index: {}]
  %s8 = inlined_call_operand.vmem [shape: f32[1,16], index: 8, kind: input, shape index: {}]
  %s9 = inlined_call_operand.vmem [shape: f32[1,1,16], index: 9, kind: input, shape index: {}]
  %s10 = inlined_call_operand.<no memory space> [shape: f32[1,1,1], index: 10, kind: input, shape index: {}]
  %s11 = inlined_call_operand.vmem [shape: f32[80,16], index: 11, kind: input, shape index: {}]
  %s12 = inlined_call_operand.vmem [shape: f32[1,16], index: 12, kind: input, shape index: {}]
  %s13 = inlined_call_operand.vmem [shape: f32[16,16], index: 13, kind: input, shape index: {}]
  %s14 = inlined_call_operand.vmem [shape: f32[1,16], index: 14, kind: input, shape index: {}]
  %s15 = inlined_call_operand.vmem [shape: f32[1,1,16], index: 15, kind: input, shape index: {}]
  %s16 = inlined_call_operand.<no memory space> [shape: f32[1,1,1], index: 16, kind: input, shape index: {}]
  %s17 = inlined_call_operand.vmem [shape: f32[16,5], index: 17, kind: input, shape index: {}]
  %s18 = inlined_call_operand.vmem [shape: f32[1,5], index: 18, kind: input, shape index: {}]
  %s19 = inlined_call_operand.hbm [shape: f32[2,5], index: 19, kind: output, shape index: {0}]
  %s20 = inlined_call_operand.vmem [shape: f32[6,16,1], index: 20, kind: output, shape index: {1}]
  %s21 = inlined_call_operand.vmem [shape: f32[2,8,1], index: 21, kind: output, shape index: {2}]
  %22 = xla_tuple %s19, %s20, %s21
  %s23 = sld [smem:[#allocation0]]
  $region102: #{han_model_cnn_forward.1} parent=0
    _
  %s25 = ssub.s32 1, %s23
  %s26 = scalar_select 0, %s25, %s23
  %v27 = vstv %s10
  %28 = vst [vmem:[#allocation4] sm:$0x1] %v27
  %v29 = vstv %s16
  %30 = vst [vmem:[#allocation5] sm:$0x1] %v29
  $region1: #{han_model_cnn_forward.1} parent=0
    #allocation6 [shape = 'u8[1024]{0}', space=vmem, size = 0x400, scoped, tag = 'output window, operand 0, single buffered']
    #allocation7 [shape = 's32[1]{0}', space=sflag, size = 0x4, scoped, tag = 'scoped memory for han_model_cnn_forward.1']
    %31 = vsyncpa [#allocation7], 0
    // Predicated region
    $region2: #{han_model_cnn_forward.1} parent=1 // pred_check
      _
    $region3: #{han_model_cnn_forward.1} parent=1 // pred_check_branch
      %33 = sbr.rel (0) target = $region5
    $region4: #{han_model_cnn_forward.1} parent=1 // pred_region
      _
    $region5: #{han_model_cnn_forward.1} parent=1 // pred_fallthru
      _
    // Predicated region
    $region6: #{han_model_cnn_forward.1} parent=1 // pred_check
      _
    $region7: #{han_model_cnn_forward.1} parent=1 // pred_check_branch
      %35 = sbr.rel (0) target = $region9
    $region8: #{han_model_cnn_forward.1} parent=1 // pred_region
      _
    $region9: #{han_model_cnn_forward.1} parent=1 // pred_fallthru
      _
    // Predicated region
    $region10: #{han_model_cnn_forward.1} parent=1 // pred_check
      _
    $region11: #{han_model_cnn_forward.1} parent=1 // pred_check_branch
      %37 = sbr.rel (0) target = $region13
    $region12: #{han_model_cnn_forward.1} parent=1 // pred_region
      _
    $region13: #{han_model_cnn_forward.1} parent=1 // pred_fallthru
      _
    // Predicated region
    $region14: #{han_model_cnn_forward.1} parent=1 // pred_check
      _
    $region15: #{han_model_cnn_forward.1} parent=1 // pred_check_branch
      %39 = sbr.rel (0) target = $region17
    $region16: #{han_model_cnn_forward.1} parent=1 // pred_region
      _
    $region17: #{han_model_cnn_forward.1} parent=1 // pred_fallthru
      _
    // Predicated region
    $region18: #{han_model_cnn_forward.1} parent=1 // pred_check
      _
    $region19: #{han_model_cnn_forward.1} parent=1 // pred_check_branch
      %41 = sbr.rel (0) target = $region21
    $region20: #{han_model_cnn_forward.1} parent=1 // pred_region
      _
    $region21: #{han_model_cnn_forward.1} parent=1 // pred_fallthru
      _
    // Predicated region
    $region22: #{han_model_cnn_forward.1} parent=1 // pred_check
      _
    $region23: #{han_model_cnn_forward.1} parent=1 // pred_check_branch
      %43 = sbr.rel (0) target = $region25
    $region24: #{han_model_cnn_forward.1} parent=1 // pred_region
      _
    $region25: #{han_model_cnn_forward.1} parent=1 // pred_fallthru
      _
    // Predicated region
    $region26: #{han_model_cnn_forward.1} parent=1 // pred_check
      _
    $region27: #{han_model_cnn_forward.1} parent=1 // pred_check_branch
      %45 = sbr.rel (0) target = $region29
    $region28: #{han_model_cnn_forward.1} parent=1 // pred_region
      _
    $region29: #{han_model_cnn_forward.1} parent=1 // pred_fallthru
      _
    // Predicated region
    $region30: #{han_model_cnn_forward.1} parent=1 // pred_check
      _
    $region31: #{han_model_cnn_forward.1} parent=1 // pred_check_branch
      %47 = sbr.rel (0) target = $region33
    $region32: #{han_model_cnn_forward.1} parent=1 // pred_region
      _
    $region33: #{han_model_cnn_forward.1} parent=1 // pred_fallthru
      _
    // Predicated region
    $region34: #{han_model_cnn_forward.1} parent=1 // pred_check
      _
    $region35: #{han_model_cnn_forward.1} parent=1 // pred_check_branch
      %49 = sbr.rel (0) target = $region37
    $region36: #{han_model_cnn_forward.1} parent=1 // pred_region
      _
    $region37: #{han_model_cnn_forward.1} parent=1 // pred_fallthru
      _
    // Predicated region
    $region38: #{han_model_cnn_forward.1} parent=1 // pred_check
      _
    $region39: #{han_model_cnn_forward.1} parent=1 // pred_check_branch
      %51 = sbr.rel (0) target = $region41
    $region40: #{han_model_cnn_forward.1} parent=1 // pred_region
      _
    $region41: #{han_model_cnn_forward.1} parent=1 // pred_fallthru
      _
    // Predicated region
    $region42: #{han_model_cnn_forward.1} parent=1 // pred_check
      _
    $region43: #{han_model_cnn_forward.1} parent=1 // pred_check_branch
      %53 = sbr.rel (0) target = $region45
    $region44: #{han_model_cnn_forward.1} parent=1 // pred_region
      _
    $region45: #{han_model_cnn_forward.1} parent=1 // pred_fallthru
      _
    // Predicated region
    $region46: #{han_model_cnn_forward.1} parent=1 // pred_check
      _
    $region47: #{han_model_cnn_forward.1} parent=1 // pred_check_branch
      %55 = sbr.rel (0) target = $region49
    $region48: #{han_model_cnn_forward.1} parent=1 // pred_region
      _
    $region49: #{han_model_cnn_forward.1} parent=1 // pred_fallthru
      _
    // Predicated region
    $region50: #{han_model_cnn_forward.1} parent=1 // pred_check
      _
    $region51: #{han_model_cnn_forward.1} parent=1 // pred_check_branch
      %57 = sbr.rel (0) target = $region53
    $region52: #{han_model_cnn_forward.1} parent=1 // pred_region
      _
    $region53: #{han_model_cnn_forward.1} parent=1 // pred_fallthru
      _
    // Predicated region
    $region54: #{han_model_cnn_forward.1} parent=1 // pred_check
      _
    $region55: #{han_model_cnn_forward.1} parent=1 // pred_check_branch
      %59 = sbr.rel (0) target = $region57
    $region56: #{han_model_cnn_forward.1} parent=1 // pred_region
      _
    $region57: #{han_model_cnn_forward.1} parent=1 // pred_fallthru
      _
    // Predicated region
    $region58: #{han_model_cnn_forward.1} parent=1 // pred_check
      _
    $region59: #{han_model_cnn_forward.1} parent=1 // pred_check_branch
      %61 = sbr.rel (0) target = $region61
    $region60: #{han_model_cnn_forward.1} parent=1 // pred_region
      _
    $region61: #{han_model_cnn_forward.1} parent=1 // pred_fallthru
      _
    // Predicated region
    $region62: #{han_model_cnn_forward.1} parent=1 // pred_check
      _
    $region63: #{han_model_cnn_forward.1} parent=1 // pred_check_branch
      %63 = sbr.rel (0) target = $region65
    $region64: #{han_model_cnn_forward.1} parent=1 // pred_region
      _
    $region65: #{han_model_cnn_forward.1} parent=1 // pred_fallthru
      _
    // Predicated region
    $region66: #{han_model_cnn_forward.1} parent=1 // pred_check
      _
    $region67: #{han_model_cnn_forward.1} parent=1 // pred_check_branch
      %65 = sbr.rel (0) target = $region69
    $region68: #{han_model_cnn_forward.1} parent=1 // pred_region
      _
    $region69: #{han_model_cnn_forward.1} parent=1 // pred_fallthru
      _
    // Predicated region
    $region70: #{han_model_cnn_forward.1} parent=1 // pred_check
      _
    $region71: #{han_model_cnn_forward.1} parent=1 // pred_check_branch
      %67 = sbr.rel (0) target = $region73
    $region72: #{han_model_cnn_forward.1} parent=1 // pred_region
      _
    $region73: #{han_model_cnn_forward.1} parent=1 // pred_fallthru
      _
    // Predicated region
    $region74: #{han_model_cnn_forward.1} parent=1 // pred_check
      _
    $region75: #{han_model_cnn_forward.1} parent=1 // pred_check_branch
      %69 = sbr.rel (0) target = $region77
    $region76: #{han_model_cnn_forward.1} parent=1 // pred_region
      _
    $region77: #{han_model_cnn_forward.1} parent=1 // pred_fallthru
      _
    %v70 = vlaneseq
    %v71 = vand.u32 %v70, 127
    %v72 = vld [vmem:[%s0] sm:$0xff]
    %v73 = vld [vmem:[%s0 + $0x8] sm:$0xff]
    %v74 = vld [vmem:[%s0 + $0x10] sm:$0xff]
    %v75 = vld [vmem:[%s0 + $0x18] sm:$0xff]
    %v76 = vld [vmem:[%s0 + $0x20] sm:$0xff]
    %v77 = vld [vmem:[%s0 + $0x28] sm:$0xff]
    %v78 = vld [vmem:[%s0 + $0x30] sm:$0xff]
    %v79 = vld [vmem:[%s0 + $0x38] sm:$0xff]
    %v80 = vld [vmem:[%s0 + $0x40] sm:$0xff]
    %v81 = vld [vmem:[%s0 + $0x48] sm:$0xff]
    %v82 = vld [vmem:[%s0 + $0x50] sm:$0xff]
    %v83 = vld [vmem:[%s0 + $0x58] sm:$0xff]
    %84 = vset.pattern.permute.xlu0 0
    %85 = vperm.xlu0 %84, %v72
    %v86 = vpop.permute.xlu0 %85
    %87 = vset.pattern.permute.xlu0 0
    %88 = vperm.xlu0 %87, %v73
    %v89 = vpop.permute.xlu0 %88
    %90 = vset.pattern.permute.xlu0 0
    %91 = vperm.xlu0 %90, %v74
    %v92 = vpop.permute.xlu0 %91
    %93 = vset.pattern.permute.xlu0 0
    %94 = vperm.xlu0 %93, %v75
    %v95 = vpop.permute.xlu0 %94
    %96 = vset.pattern.permute.xlu0 0
    %97 = vperm.xlu0 %96, %v76
    %v98 = vpop.permute.xlu0 %97
    %99 = vset.pattern.permute.xlu0 0
    %100 = vperm.xlu0 %99, %v77
    %v101 = vpop.permute.xlu0 %100
    %102 = vset.pattern.permute.xlu0 0
    %103 = vperm.xlu0 %102, %v78
    %v104 = vpop.permute.xlu0 %103
    %105 = vset.pattern.permute.xlu0 0
    %106 = vperm.xlu0 %105, %v79
    %v107 = vpop.permute.xlu0 %106
    %108 = vset.pattern.permute.xlu0 0
    %109 = vperm.xlu0 %108, %v80
    %v110 = vpop.permute.xlu0 %109
    %111 = vset.pattern.permute.xlu0 0
    %112 = vperm.xlu0 %111, %v81
    %v113 = vpop.permute.xlu0 %112
    %114 = vset.pattern.permute.xlu0 0
    %115 = vperm.xlu0 %114, %v82
    %v116 = vpop.permute.xlu0 %115
    %117 = vset.pattern.permute.xlu0 0
    %118 = vperm.xlu0 %117, %v83
    %v119 = vpop.permute.xlu0 %118
    %vm120 = vcmp.eq.s32.totalorder %v86, %v71
    %vm121 = vcmp.eq.s32.totalorder %v89, %v71
    %vm122 = vcmp.eq.s32.totalorder %v92, %v71
    %vm123 = vcmp.eq.s32.totalorder %v95, %v71
    %vm124 = vcmp.eq.s32.totalorder %v98, %v71
    %vm125 = vcmp.eq.s32.totalorder %v101, %v71
    %vm126 = vcmp.eq.s32.totalorder %v104, %v71
    %vm127 = vcmp.eq.s32.totalorder %v107, %v71
    %vm128 = vcmp.eq.s32.totalorder %v110, %v71
    %vm129 = vcmp.eq.s32.totalorder %v113, %v71
    %vm130 = vcmp.eq.s32.totalorder %v116, %v71
    %vm131 = vcmp.eq.s32.totalorder %v119, %v71
    %v132 = vsel %vm120, 1, 0
    %v133 = vsel %vm121, 1, 0
    %v134 = vsel %vm122, 1, 0
    %v135 = vsel %vm123, 1, 0
    %v136 = vsel %vm124, 1, 0
    %v137 = vsel %vm125, 1, 0
    %v138 = vsel %vm126, 1, 0
    %v139 = vsel %vm127, 1, 0
    %v140 = vsel %vm128, 1, 0
    %v141 = vsel %vm129, 1, 0
    %v142 = vsel %vm130, 1, 0
    %v143 = vsel %vm131, 1, 0
    %v144 = vcvt.s32.f32 %v132
    %v145 = vcvt.s32.f32 %v133
    %v146 = vcvt.s32.f32 %v134
    %v147 = vcvt.s32.f32 %v135
    %v148 = vcvt.s32.f32 %v136
    %v149 = vcvt.s32.f32 %v137
    %v150 = vcvt.s32.f32 %v138
    %v151 = vcvt.s32.f32 %v139
    %v152 = vcvt.s32.f32 %v140
    %v153 = vcvt.s32.f32 %v141
    %v154 = vcvt.s32.f32 %v142
    %v155 = vcvt.s32.f32 %v143
    %v156 = vld [vmem:[%s4] sm:$0xff]
    %v157 = vld [vmem:[%s4 + $0x8] sm:$0xff]
    %v158 = vld [vmem:[%s4 + $0x10] sm:$0xff]
    %v159 = vld [vmem:[%s4 + $0x18] sm:$0xff]
    %v160 = vld [vmem:[%s4 + $0x20] sm:$0xff]
    %v161 = vld [vmem:[%s4 + $0x28] sm:$0xff]
    %v162 = vld [vmem:[%s4 + $0x30] sm:$0x3]
    %vm163 = vcmask 408576
    %v165 = vsel %vm163, %v144, 0
    %v168 = vsel %vm163, %v145, 0
    %v171 = vsel %vm163, %v146, 0
    %v174 = vsel %vm163, %v147, 0
    %v177 = vsel %vm163, %v148, 0
    %v180 = vsel %vm163, %v149, 0
    %v183 = vsel %vm163, %v150, 0
    %v186 = vsel %vm163, %v151, 0
    %v189 = vsel %vm163, %v152, 0
    %v192 = vsel %vm163, %v153, 0
    %v195 = vsel %vm163, %v154, 0
    %v198 = vsel %vm163, %v155, 0
    %vm200 = vcmask 1041408
    %v202 = vsel %vm200, %v162, 0
    %204 = vmatprep.subr.mxu0 0.0
    %205 = vmatpush1.msra.mxu0 0.0
    %206 = vmatprep.subr.mxu0 0.0
    %207 = vmatpush1.msra.mxu0 0.0
    %208 = vmatprep.subr.mxu0 0.0
    %209 = vmatpush1.msra.mxu0 0.0
    %210 = vmatprep.subr.mxu0 0.0
    %211 = vmatpush1.msra.mxu0 0.0
    %212 = vmatprep.subr.mxu0 0.0
    %213 = vmatpush1.msra.mxu0 0.0
    %214 = vmatprep.subr.mxu0 0.0
    %215 = vmatpush1.msra.mxu0 0.0
    %216 = vmatprep.subr.mxu0 0.0
    %217 = vmatpush1.msra.mxu0 0.0
    %218 = vmatprep.subr.mxu0 0.0
    %219 = vmatpush1.msra.mxu0 0.0
    %220 = vmatprep.subr.mxu0 0.0
    %221 = vmatpush1.msra.mxu0 0.0
    %222 = vmatprep.subr.mxu0 0.0
    %223 = vmatpush1.msra.mxu0 %v202
    %224 = vmatprep.subr.mxu0 0.0
    %225 = vmatpush1.msra.mxu0 %v161
    %226 = vmatprep.subr.mxu0 0.0
    %227 = vmatpush1.msra.mxu0 %v160
    %228 = vmatprep.subr.mxu0 0.0
    %229 = vmatpush1.msra.mxu0 %v159
    %230 = vmatprep.subr.mxu0 0.0
    %231 = vmatpush1.msra.mxu0 %v158
    %232 = vmatprep.subr.mxu0 0.0
    %233 = vmatpush1.msra.mxu0 %v157
    %234 = vmatprep.subr.mxu0 0.0
    %235 = vmatpush1.msra.mxu0 %v156
    %236 = vmatprep.subr.mxu0 0.0
    %237 = vmatpush2.msra.mxu0 0.0
    %238 = vmatprep.subr.mxu0 0.0
    %239 = vmatpush2.msra.mxu0 0.0
    %240 = vmatprep.subr.mxu0 0.0
    %241 = vmatpush2.msra.mxu0 0.0
    %242 = vmatprep.subr.mxu0 0.0
    %243 = vmatpush2.msra.mxu0 0.0
    %244 = vmatprep.subr.mxu0 0.0
    %245 = vmatpush2.msra.mxu0 0.0
    %246 = vmatprep.subr.mxu0 0.0
    %247 = vmatpush2.msra.mxu0 0.0
    %248 = vmatprep.subr.mxu0 0.0
    %249 = vmatpush2.msra.mxu0 0.0
    %250 = vmatprep.subr.mxu0 0.0
    %251 = vmatpush2.msra.mxu0 0.0
    %252 = vmatprep.subr.mxu0 0.0
    %253 = vmatpush2.msra.mxu0 0.0
    %254 = vmatprep.subr.mxu0 0.0
    %255 = vmatpush2.msra.mxu0 0.0
    %256 = vmatprep.subr.mxu0 0.0
    %257 = vmatpush2.msra.mxu0 0.0
    %258 = vmatprep.subr.mxu0 0.0
    %259 = vmatpush2.msra.mxu0 0.0
    %260 = vmatprep.subr.mxu0 0.0
    %261 = vmatpush2.msra.mxu0 0.0
    %262 = vmatprep.subr.mxu0 0.0
    %263 = vmatpush2.msra.mxu0 0.0
    %264 = vmatprep.subr.mxu0 0.0
    %265 = vmatpush2.msra.mxu0 0.0
    %266 = vmatprep.subr.mxu0 0.0
    %267 = vmatpush2.msra.mxu0 0.0
    %268 = vmatprep.mubr.f32.mxu0 0.0
    %269 = vmatmul.mubr.f32.gmra.mxu0 %v165
    %v270 = vpop.f32.mrf.mxu0
    %v271 = vadd.f32 0.0, %v270
    %v272 = vpop.f32.mrf.mxu0
    %273 = vmatprep.mubr.f32.mxu0 0.0
    %274 = vmatmul.mubr.f32.gmra.mxu0 %v168
    %v275 = vpop.f32.mrf.mxu0
    %v276 = vadd.f32 0.0, %v275
    %v277 = vpop.f32.mrf.mxu0
    %278 = vmatprep.mubr.f32.mxu0 0.0
    %279 = vmatmul.mubr.f32.gmra.mxu0 %v171
    %v280 = vpop.f32.mrf.mxu0
    %v281 = vadd.f32 0.0, %v280
    %v282 = vpop.f32.mrf.mxu0
    %283 = vmatprep.mubr.f32.mxu0 0.0
    %284 = vmatmul.mubr.f32.gmra.mxu0 %v174
    %v285 = vpop.f32.mrf.mxu0
    %v286 = vadd.f32 0.0, %v285
    %v287 = vpop.f32.mrf.mxu0
    %288 = vmatprep.mubr.f32.mxu0 0.0
    %289 = vmatmul.mubr.f32.gmra.mxu0 %v177
    %v290 = vpop.f32.mrf.mxu0
    %v291 = vadd.f32 0.0, %v290
    %v292 = vpop.f32.mrf.mxu0
    %293 = vmatprep.mubr.f32.mxu0 0.0
    %294 = vmatmul.mubr.f32.gmra.mxu0 %v180
    %v295 = vpop.f32.mrf.mxu0
    %v296 = vadd.f32 0.0, %v295
    %v297 = vpop.f32.mrf.mxu0
    %298 = vmatprep.mubr.f32.mxu0 0.0
    %299 = vmatmul.mubr.f32.gmra.mxu0 %v183
    %v300 = vpop.f32.mrf.mxu0
    %v301 = vadd.f32 0.0, %v300
    %v302 = vpop.f32.mrf.mxu0
    %303 = vmatprep.mubr.f32.mxu0 0.0
    %304 = vmatmul.mubr.f32.gmra.mxu0 %v186
    %v305 = vpop.f32.mrf.mxu0
    %v306 = vadd.f32 0.0, %v305
    %v307 = vpop.f32.mrf.mxu0
    %308 = vmatprep.mubr.f32.mxu0 0.0
    %309 = vmatmul.mubr.f32.gmra.mxu0 %v189
    %v310 = vpop.f32.mrf.mxu0
    %v311 = vadd.f32 0.0, %v310
    %v312 = vpop.f32.mrf.mxu0
    %313 = vmatprep.mubr.f32.mxu0 0.0
    %314 = vmatmul.mubr.f32.gmra.mxu0 %v192
    %v315 = vpop.f32.mrf.mxu0
    %v316 = vadd.f32 0.0, %v315
    %v317 = vpop.f32.mrf.mxu0
    %318 = vmatprep.mubr.f32.mxu0 0.0
    %319 = vmatmul.mubr.f32.gmra.mxu0 %v195
    %v320 = vpop.f32.mrf.mxu0
    %v321 = vadd.f32 0.0, %v320
    %v322 = vpop.f32.mrf.mxu0
    %323 = vmatprep.mubr.f32.mxu0 0.0
    %324 = vmatmul.mubr.f32.gmra.mxu0 %v198
    %v325 = vpop.f32.mrf.mxu0
    %v326 = vadd.f32 0.0, %v325
    %v327 = vpop.f32.mrf.mxu0
    %328 = vdwg.mxu0
    %v329 = vld [vmem:[%s5] sm:$0xff]
    %v330 = vld [vmem:[%s5 + $0x8] sm:$0xff]
    %v331 = vld [vmem:[%s5 + $0x10] sm:$0xff]
    %v332 = vld [vmem:[%s5 + $0x18] sm:$0xff]
    %v333 = vld [vmem:[%s5 + $0x20] sm:$0xff]
    %v334 = vld [vmem:[%s5 + $0x28] sm:$0xff]
    %v335 = vld [vmem:[%s5 + $0x30] sm:$0xff]
    %v336 = vld [vmem:[%s5 + $0x38] sm:$0xff]
    %v337 = vld [vmem:[%s5 + $0x40] sm:$0xff]
    %v338 = vld [vmem:[%s5 + $0x48] sm:$0xff]
    %v339 = vld [vmem:[%s5 + $0x50] sm:$0xff]
    %v340 = vld [vmem:[%s5 + $0x58] sm:$0xff]
    %v341 = vld [vmem:[%s5 + $0x60] sm:$0xff]
    %v342 = vld [vmem:[%s5 + $0x68] sm:$0xff]
    %v343 = vld [vmem:[%s5 + $0x70] sm:$0xff]
    %v344 = vld [vmem:[%s5 + $0x78] sm:$0xff]
    %v345 = vld [vmem:[%s5 + $0x80] sm:$0xff]
    %v346 = vld [vmem:[%s5 + $0x88] sm:$0xff]
    %v347 = vld [vmem:[%s5 + $0x90] sm:$0xff]
    %v348 = vld [vmem:[%s5 + $0x98] sm:$0xff]
    %v349 = vld [vmem:[%s6] sm:$0x1]
    %vm350 = vcmask 254976
    %351 = vst.msk [vmem:[#allocation2] sm:$0x3] %vm350, 0.0
    %352 = vst.msk [vmem:[#allocation2 + $0x18] sm:$0x3] %vm350, 0.0
    %353 = vst.msk [vmem:[#allocation2 + $0x30] sm:$0x3] %vm350, 0.0
    %354 = vst.msk [vmem:[#allocation2 + $0x48] sm:$0x3] %vm350, 0.0
    %355 = vst.msk [vmem:[#allocation2 + $0x60] sm:$0x3] %vm350, 0.0
    %356 = vst.msk [vmem:[#allocation2 + $0x78] sm:$0x3] %vm350, 0.0
    %357 = vst.msk [vmem:[#allocation2 + $0x12] sm:$0x3] %vm350, 0.0
    %358 = vst.msk [vmem:[#allocation2 + $0x2a] sm:$0x3] %vm350, 0.0
    %359 = vst.msk [vmem:[#allocation2 + $0x42] sm:$0x3] %vm350, 0.0
    %360 = vst.msk [vmem:[#allocation2 + $0x5a] sm:$0x3] %vm350, 0.0
    %361 = vst.msk [vmem:[#allocation2 + $0x72] sm:$0x3] %vm350, 0.0
    %362 = vst.msk [vmem:[#allocation2 + $0x8a] sm:$0x3] %vm350, 0.0
    %vm363 = vcmask 261120
    %364 = vst.msk [vmem:[#allocation2 + $0x2] sm:$0xff] %vm363, %v271
    %365 = vst.msk [vmem:[#allocation2 + $0xa] sm:$0xff] %vm363, %v276
    %366 = vst.msk [vmem:[#allocation2 + $0x1a] sm:$0xff] %vm363, %v281
    %367 = vst.msk [vmem:[#allocation2 + $0x22] sm:$0xff] %vm363, %v286
    %368 = vst.msk [vmem:[#allocation2 + $0x32] sm:$0xff] %vm363, %v291
    %369 = vst.msk [vmem:[#allocation2 + $0x3a] sm:$0xff] %vm363, %v296
    %370 = vst.msk [vmem:[#allocation2 + $0x4a] sm:$0xff] %vm363, %v301
    %371 = vst.msk [vmem:[#allocation2 + $0x52] sm:$0xff] %vm363, %v306
    %372 = vst.msk [vmem:[#allocation2 + $0x62] sm:$0xff] %vm363, %v311
    %373 = vst.msk [vmem:[#allocation2 + $0x6a] sm:$0xff] %vm363, %v316
    %374 = vst.msk [vmem:[#allocation2 + $0x7a] sm:$0xff] %vm363, %v321
    %375 = vst.msk [vmem:[#allocation2 + $0x82] sm:$0xff] %vm363, %v326
    %v376 = vld [vmem:[#allocation2] sm:$0xff]
    %v377 = vld [vmem:[#allocation2 + $0x8] sm:$0xff]
    %v378 = vld [vmem:[#allocation2 + $0x18] sm:$0xff]
    %v379 = vld [vmem:[#allocation2 + $0x20] sm:$0xff]
    %v380 = vld [vmem:[#allocation2 + $0x30] sm:$0xff]
    %v381 = vld [vmem:[#allocation2 + $0x38] sm:$0xff]
    %v382 = vld [vmem:[#allocation2 + $0x48] sm:$0xff]
    %v383 = vld [vmem:[#allocation2 + $0x50] sm:$0xff]
    %v384 = vld [vmem:[#allocation2 + $0x60] sm:$0xff]
    %v385 = vld [vmem:[#allocation2 + $0x68] sm:$0xff]
    %v386 = vld [vmem:[#allocation2 + $0x78] sm:$0xff]
    %v387 = vld [vmem:[#allocation2 + $0x80] sm:$0xff]
    %v388 = vld [vmem:[#allocation2 + $0x1] sm:$0xff]
    %v389 = vld [vmem:[#allocation2 + $0x9] sm:$0xff]
    %v390 = vld [vmem:[#allocation2 + $0x19] sm:$0xff]
    %v391 = vld [vmem:[#allocation2 + $0x21] sm:$0xff]
    %v392 = vld [vmem:[#allocation2 + $0x31] sm:$0xff]
    %v393 = vld [vmem:[#allocation2 + $0x39] sm:$0xff]
    %v394 = vld [vmem:[#allocation2 + $0x49] sm:$0xff]
    %v395 = vld [vmem:[#allocation2 + $0x51] sm:$0xff]
    %v396 = vld [vmem:[#allocation2 + $0x61] sm:$0xff]
    %v397 = vld [vmem:[#allocation2 + $0x69] sm:$0xff]
    %v398 = vld [vmem:[#allocation2 + $0x79] sm:$0xff]
    %v399 = vld [vmem:[#allocation2 + $0x81] sm:$0xff]
    %v400 = vld [vmem:[#allocation2 + $0x2] sm:$0xff]
    %v401 = vld [vmem:[#allocation2 + $0xa] sm:$0xff]
    %v402 = vld [vmem:[#allocation2 + $0x1a] sm:$0xff]
    %v403 = vld [vmem:[#allocation2 + $0x22] sm:$0xff]
    %v404 = vld [vmem:[#allocation2 + $0x32] sm:$0xff]
    %v405 = vld [vmem:[#allocation2 + $0x3a] sm:$0xff]
    %v406 = vld [vmem:[#allocation2 + $0x4a] sm:$0xff]
    %v407 = vld [vmem:[#allocation2 + $0x52] sm:$0xff]
    %v408 = vld [vmem:[#allocation2 + $0x62] sm:$0xff]
    %v409 = vld [vmem:[#allocation2 + $0x6a] sm:$0xff]
    %v410 = vld [vmem:[#allocation2 + $0x7a] sm:$0xff]
    %v411 = vld [vmem:[#allocation2 + $0x82] sm:$0xff]
    %v412 = vld [vmem:[#allocation2 + $0x3] sm:$0xff]
    %v413 = vld [vmem:[#allocation2 + $0xb] sm:$0xff]
    %v414 = vld [vmem:[#allocation2 + $0x1b] sm:$0xff]
    %v415 = vld [vmem:[#allocation2 + $0x23] sm:$0xff]
    %v416 = vld [vmem:[#allocation2 + $0x33] sm:$0xff]
    %v417 = vld [vmem:[#allocation2 + $0x3b] sm:$0xff]
    %v418 = vld [vmem:[#allocation2 + $0x4b] sm:$0xff]
    %v419 = vld [vmem:[#allocation2 + $0x53] sm:$0xff]
    %v420 = vld [vmem:[#allocation2 + $0x63] sm:$0xff]
    %v421 = vld [vmem:[#allocation2 + $0x6b] sm:$0xff]
    %v422 = vld [vmem:[#allocation2 + $0x7b] sm:$0xff]
    %v423 = vld [vmem:[#allocation2 + $0x83] sm:$0xff]
    %v424 = vld [vmem:[#allocation2 + $0x4] sm:$0xff]
    %v425 = vld [vmem:[#allocation2 + $0xc] sm:$0xff]
    %v426 = vld [vmem:[#allocation2 + $0x1c] sm:$0xff]
    %v427 = vld [vmem:[#allocation2 + $0x24] sm:$0xff]
    %v428 = vld [vmem:[#allocation2 + $0x34] sm:$0xff]
    %v429 = vld [vmem:[#allocation2 + $0x3c] sm:$0xff]
    %v430 = vld [vmem:[#allocation2 + $0x4c] sm:$0xff]
    %v431 = vld [vmem:[#allocation2 + $0x54] sm:$0xff]
    %v432 = vld [vmem:[#allocation2 + $0x64] sm:$0xff]
    %v433 = vld [vmem:[#allocation2 + $0x6c] sm:$0xff]
    %v434 = vld [vmem:[#allocation2 + $0x7c] sm:$0xff]
    %v435 = vld [vmem:[#allocation2 + $0x84] sm:$0xff]
    %448 = vrot.lane.b32.xlu0 %v388, 32
    %v449 = vpop.permute.xlu0 %448
    %450 = vrot.lane.b32.xlu0 %v389, 32
    %v451 = vpop.permute.xlu0 %450
    %452 = vrot.lane.b32.xlu0 %v390, 32
    %v453 = vpop.permute.xlu0 %452
    %454 = vrot.lane.b32.xlu0 %v391, 32
    %v455 = vpop.permute.xlu0 %454
    %456 = vrot.lane.b32.xlu0 %v392, 32
    %v457 = vpop.permute.xlu0 %456
    %458 = vrot.lane.b32.xlu0 %v393, 32
    %v459 = vpop.permute.xlu0 %458
    %460 = vrot.lane.b32.xlu0 %v394, 32
    %v461 = vpop.permute.xlu0 %460
    %462 = vrot.lane.b32.xlu0 %v395, 32
    %v463 = vpop.permute.xlu0 %462
    %464 = vrot.lane.b32.xlu0 %v396, 32
    %v465 = vpop.permute.xlu0 %464
    %466 = vrot.lane.b32.xlu0 %v397, 32
    %v467 = vpop.permute.xlu0 %466
    %468 = vrot.lane.b32.xlu0 %v398, 32
    %v469 = vpop.permute.xlu0 %468
    %470 = vrot.lane.b32.xlu0 %v399, 32
    %v471 = vpop.permute.xlu0 %470
    %496 = vrot.lane.b32.xlu0 %v400, 64
    %v497 = vpop.permute.xlu0 %496
    %498 = vrot.lane.b32.xlu0 %v401, 64
    %v499 = vpop.permute.xlu0 %498
    %500 = vrot.lane.b32.xlu0 %v402, 64
    %v501 = vpop.permute.xlu0 %500
    %502 = vrot.lane.b32.xlu0 %v403, 64
    %v503 = vpop.permute.xlu0 %502
    %504 = vrot.lane.b32.xlu0 %v404, 64
    %v505 = vpop.permute.xlu0 %504
    %506 = vrot.lane.b32.xlu0 %v405, 64
    %v507 = vpop.permute.xlu0 %506
    %508 = vrot.lane.b32.xlu0 %v406, 64
    %v509 = vpop.permute.xlu0 %508
    %510 = vrot.lane.b32.xlu0 %v407, 64
    %v511 = vpop.permute.xlu0 %510
    %512 = vrot.lane.b32.xlu0 %v408, 64
    %v513 = vpop.permute.xlu0 %512
    %514 = vrot.lane.b32.xlu0 %v409, 64
    %v515 = vpop.permute.xlu0 %514
    %516 = vrot.lane.b32.xlu0 %v410, 64
    %v517 = vpop.permute.xlu0 %516
    %518 = vrot.lane.b32.xlu0 %v411, 64
    %v519 = vpop.permute.xlu0 %518
    %544 = vrot.lane.b32.xlu0 %v412, 96
    %v545 = vpop.permute.xlu0 %544
    %546 = vrot.lane.b32.xlu0 %v413, 96
    %v547 = vpop.permute.xlu0 %546
    %548 = vrot.lane.b32.xlu0 %v414, 96
    %v549 = vpop.permute.xlu0 %548
    %550 = vrot.lane.b32.xlu0 %v415, 96
    %v551 = vpop.permute.xlu0 %550
    %552 = vrot.lane.b32.xlu0 %v416, 96
    %v553 = vpop.permute.xlu0 %552
    %554 = vrot.lane.b32.xlu0 %v417, 96
    %v555 = vpop.permute.xlu0 %554
    %556 = vrot.lane.b32.xlu0 %v418, 96
    %v557 = vpop.permute.xlu0 %556
    %558 = vrot.lane.b32.xlu0 %v419, 96
    %v559 = vpop.permute.xlu0 %558
    %560 = vrot.lane.b32.xlu0 %v420, 96
    %v561 = vpop.permute.xlu0 %560
    %562 = vrot.lane.b32.xlu0 %v421, 96
    %v563 = vpop.permute.xlu0 %562
    %564 = vrot.lane.b32.xlu0 %v422, 96
    %v565 = vpop.permute.xlu0 %564
    %566 = vrot.lane.b32.xlu0 %v423, 96
    %v567 = vpop.permute.xlu0 %566
    %v580 = vsel %vm363, %v376, %v449
    %v581 = vsel %vm363, %v377, %v451
    %v582 = vsel %vm363, %v378, %v453
    %v583 = vsel %vm363, %v379, %v455
    %v584 = vsel %vm363, %v380, %v457
    %v585 = vsel %vm363, %v381, %v459
    %v586 = vsel %vm363, %v382, %v461
    %v587 = vsel %vm363, %v383, %v463
    %v588 = vsel %vm363, %v384, %v465
    %v589 = vsel %vm363, %v385, %v467
    %v590 = vsel %vm363, %v386, %v469
    %v591 = vsel %vm363, %v387, %v471
    %vm592 = vcmask 523264
    %v593 = vsel %vm592, %v580, %v497
    %v594 = vsel %vm592, %v581, %v499
    %v595 = vsel %vm592, %v582, %v501
    %v596 = vsel %vm592, %v583, %v503
    %v597 = vsel %vm592, %v584, %v505
    %v598 = vsel %vm592, %v585, %v507
    %v599 = vsel %vm592, %v586, %v509
    %v600 = vsel %vm592, %v587, %v511
    %v601 = vsel %vm592, %v588, %v513
    %v602 = vsel %vm592, %v589, %v515
    %v603 = vsel %vm592, %v590, %v517
    %v604 = vsel %vm592, %v591, %v519
    %vm605 = vcmask 785408
    %v606 = vsel %vm605, %v593, %v545
    %v607 = vsel %vm605, %v594, %v547
    %v608 = vsel %vm605, %v595, %v549
    %v609 = vsel %vm605, %v596, %v551
    %v610 = vsel %vm605, %v597, %v553
    %v611 = vsel %vm605, %v598, %v555
    %v612 = vsel %vm605, %v599, %v557
    %v613 = vsel %vm605, %v600, %v559
    %v614 = vsel %vm605, %v601, %v561
    %v615 = vsel %vm605, %v602, %v563
    %v616 = vsel %vm605, %v603, %v565
    %v617 = vsel %vm605, %v604, %v567
    %v619 = vlaneseq
    %v620 = vshrl.u32 %v619, 7
    %v621 = vsub.s32 0, %v620
    %v622 = vrot.slane %v349, %v621
    %v625 = vsel %vm363, %v424, 0
    %v628 = vsel %vm363, %v425, 0
    %v631 = vsel %vm363, %v426, 0
    %v634 = vsel %vm363, %v427, 0
    %v637 = vsel %vm363, %v428, 0
    %v640 = vsel %vm363, %v429, 0
    %v643 = vsel %vm363, %v430, 0
    %v646 = vsel %vm363, %v431, 0
    %v649 = vsel %vm363, %v432, 0
    %v652 = vsel %vm363, %v433, 0
    %v655 = vsel %vm363, %v434, 0
    %v658 = vsel %vm363, %v435, 0
    %660 = vmatprep.subr.mxu0 0.0
    %661 = vmatpush1.msra.mxu0 %v344
    %662 = vmatprep.subr.mxu0 0.0
    %663 = vmatpush1.msra.mxu0 %v343
    %664 = vmatprep.subr.mxu0 0.0
    %665 = vmatpush1.msra.mxu0 %v342
    %666 = vmatprep.subr.mxu0 0.0
    %667 = vmatpush1.msra.mxu0 %v341
    %668 = vmatprep.subr.mxu0 0.0
    %669 = vmatpush1.msra.mxu0 %v340
    %670 = vmatprep.subr.mxu0 0.0
    %671 = vmatpush1.msra.mxu0 %v339
    %672 = vmatprep.subr.mxu0 0.0
    %673 = vmatpush1.msra.mxu0 %v338
    %674 = vmatprep.subr.mxu0 0.0
    %675 = vmatpush1.msra.mxu0 %v337
    %676 = vmatprep.subr.mxu0 0.0
    %677 = vmatpush1.msra.mxu0 %v336
    %678 = vmatprep.subr.mxu0 0.0
    %679 = vmatpush1.msra.mxu0 %v335
    %680 = vmatprep.subr.mxu0 0.0
    %681 = vmatpush1.msra.mxu0 %v334
    %682 = vmatprep.subr.mxu0 0.0
    %683 = vmatpush1.msra.mxu0 %v333
    %684 = vmatprep.subr.mxu0 0.0
    %685 = vmatpush1.msra.mxu0 %v332
    %686 = vmatprep.subr.mxu0 0.0
    %687 = vmatpush1.msra.mxu0 %v331
    %688 = vmatprep.subr.mxu0 0.0
    %689 = vmatpush1.msra.mxu0 %v330
    %690 = vmatprep.subr.mxu0 0.0
    %691 = vmatpush1.msra.mxu0 %v329
    %692 = vmatprep.subr.mxu0 0.0
    %693 = vmatpush2.msra.mxu0 0.0
    %694 = vmatprep.subr.mxu0 0.0
    %695 = vmatpush2.msra.mxu0 0.0
    %696 = vmatprep.subr.mxu0 0.0
    %697 = vmatpush2.msra.mxu0 0.0
    %698 = vmatprep.subr.mxu0 0.0
    %699 = vmatpush2.msra.mxu0 0.0
    %700 = vmatprep.subr.mxu0 0.0
    %701 = vmatpush2.msra.mxu0 0.0
    %702 = vmatprep.subr.mxu0 0.0
    %703 = vmatpush2.msra.mxu0 0.0
    %704 = vmatprep.subr.mxu0 0.0
    %705 = vmatpush2.msra.mxu0 0.0
    %706 = vmatprep.subr.mxu0 0.0
    %707 = vmatpush2.msra.mxu0 0.0
    %708 = vmatprep.subr.mxu0 0.0
    %709 = vmatpush2.msra.mxu0 0.0
    %710 = vmatprep.subr.mxu0 0.0
    %711 = vmatpush2.msra.mxu0 0.0
    %712 = vmatprep.subr.mxu0 0.0
    %713 = vmatpush2.msra.mxu0 0.0
    %714 = vmatprep.subr.mxu0 0.0
    %715 = vmatpush2.msra.mxu0 0.0
    %716 = vmatprep.subr.mxu0 0.0
    %717 = vmatpush2.msra.mxu0 %v348
    %718 = vmatprep.subr.mxu0 0.0
    %719 = vmatpush2.msra.mxu0 %v347
    %720 = vmatprep.subr.mxu0 0.0
    %721 = vmatpush2.msra.mxu0 %v346
    %722 = vmatprep.subr.mxu0 0.0
    %723 = vmatpush2.msra.mxu0 %v345
    %724 = vmatprep.mubr.f32.mxu0 %v625
    %725 = vmatmul.mubr.f32.gmra.mxu0 %v606
    %v726 = vpop.f32.mrf.mxu0
    %v727 = vadd.f32 %v622, %v726
    %v728 = vpop.f32.mrf.mxu0
    %729 = vmatprep.mubr.f32.mxu0 %v628
    %730 = vmatmul.mubr.f32.gmra.mxu0 %v607
    %v731 = vpop.f32.mrf.mxu0
    %v732 = vadd.f32 %v622, %v731
    %v733 = vpop.f32.mrf.mxu0
    %734 = vmatprep.mubr.f32.mxu0 %v631
    %735 = vmatmul.mubr.f32.gmra.mxu0 %v608
    %v736 = vpop.f32.mrf.mxu0
    %v737 = vadd.f32 %v622, %v736
    %v738 = vpop.f32.mrf.mxu0
    %739 = vmatprep.mubr.f32.mxu0 %v634
    %740 = vmatmul.mubr.f32.gmra.mxu0 %v609
    %v741 = vpop.f32.mrf.mxu0
    %v742 = vadd.f32 %v622, %v741
    %v743 = vpop.f32.mrf.mxu0
    %744 = vmatprep.mubr.f32.mxu0 %v637
    %745 = vmatmul.mubr.f32.gmra.mxu0 %v610
    %v746 = vpop.f32.mrf.mxu0
    %v747 = vadd.f32 %v622, %v746
    %v748 = vpop.f32.mrf.mxu0
    %749 = vmatprep.mubr.f32.mxu0 %v640
    %750 = vmatmul.mubr.f32.gmra.mxu0 %v611
    %v751 = vpop.f32.mrf.mxu0
    %v752 = vadd.f32 %v622, %v751
    %v753 = vpop.f32.mrf.mxu0
    %754 = vmatprep.mubr.f32.mxu0 %v643
    %755 = vmatmul.mubr.f32.gmra.mxu0 %v612
    %v756 = vpop.f32.mrf.mxu0
    %v757 = vadd.f32 %v622, %v756
    %v758 = vpop.f32.mrf.mxu0
    %759 = vmatprep.mubr.f32.mxu0 %v646
    %760 = vmatmul.mubr.f32.gmra.mxu0 %v613
    %v761 = vpop.f32.mrf.mxu0
    %v762 = vadd.f32 %v622, %v761
    %v763 = vpop.f32.mrf.mxu0
    %764 = vmatprep.mubr.f32.mxu0 %v649
    %765 = vmatmul.mubr.f32.gmra.mxu0 %v614
    %v766 = vpop.f32.mrf.mxu0
    %v767 = vadd.f32 %v622, %v766
    %v768 = vpop.f32.mrf.mxu0
    %769 = vmatprep.mubr.f32.mxu0 %v652
    %770 = vmatmul.mubr.f32.gmra.mxu0 %v615
    %v771 = vpop.f32.mrf.mxu0
    %v772 = vadd.f32 %v622, %v771
    %v773 = vpop.f32.mrf.mxu0
    %774 = vmatprep.mubr.f32.mxu0 %v655
    %775 = vmatmul.mubr.f32.gmra.mxu0 %v616
    %v776 = vpop.f32.mrf.mxu0
    %v777 = vadd.f32 %v622, %v776
    %v778 = vpop.f32.mrf.mxu0
    %779 = vmatprep.mubr.f32.mxu0 %v658
    %780 = vmatmul.mubr.f32.gmra.mxu0 %v617
    %v781 = vpop.f32.mrf.mxu0
    %v782 = vadd.f32 %v622, %v781
    %v783 = vpop.f32.mrf.mxu0
    %784 = vdwg.mxu0
    %v785 = vld [vmem:[%s1] sm:$0x1]
    %v786 = vld [vmem:[%s1 + $0x1] sm:$0x1]
    %v787 = vld [vmem:[%s1 + $0x2] sm:$0x1]
    %v788 = vld [vmem:[%s1 + $0x3] sm:$0x1]
    %v789 = vld [vmem:[%s1 + $0x4] sm:$0x1]
    %v790 = vld [vmem:[%s1 + $0x5] sm:$0x1]
    %v791 = vld [vmem:[%s7] sm:$0xff]
    %v792 = vld [vmem:[%s7 + $0x8] sm:$0xff]
    %v793 = vld [vmem:[%s8] sm:$0x1]
    %v794 = vld [vmem:[%s9] sm:$0x1]
    %v795 = vld [vmem:[#allocation4] sm:$0x1]
    %v797 = vlaneseq
    %v798 = vshrl.u32 %v797, 7
    %v799 = vsub.s32 0, %v798
    %v800 = vrot.slane %v793, %v799
    %vm802 = vcmask 130048
    %v804 = vsel %vm802, %v727, 0
    %v807 = vsel %vm802, %v732, 0
    %v810 = vsel %vm802, %v737, 0
    %v813 = vsel %vm802, %v742, 0
    %v816 = vsel %vm802, %v747, 0
    %v819 = vsel %vm802, %v752, 0
    %v822 = vsel %vm802, %v757, 0
    %v825 = vsel %vm802, %v762, 0
    %v828 = vsel %vm802, %v767, 0
    %v831 = vsel %vm802, %v772, 0
    %v834 = vsel %vm802, %v777, 0
    %v837 = vsel %vm802, %v782, 0
    %839 = vmatprep.subr.mxu0 0.0
    %840 = vmatpush1.msra.mxu0 0.0
    %841 = vmatprep.subr.mxu0 0.0
    %842 = vmatpush1.msra.mxu0 0.0
    %843 = vmatprep.subr.mxu0 0.0
    %844 = vmatpush1.msra.mxu0 0.0
    %845 = vmatprep.subr.mxu0 0.0
    %846 = vmatpush1.msra.mxu0 0.0
    %847 = vmatprep.subr.mxu0 0.0
    %848 = vmatpush1.msra.mxu0 0.0
    %849 = vmatprep.subr.mxu0 0.0
    %850 = vmatpush1.msra.mxu0 0.0
    %851 = vmatprep.subr.mxu0 0.0
    %852 = vmatpush1.msra.mxu0 0.0
    %853 = vmatprep.subr.mxu0 0.0
    %854 = vmatpush1.msra.mxu0 0.0
    %855 = vmatprep.subr.mxu0 0.0
    %856 = vmatpush1.msra.mxu0 0.0
    %857 = vmatprep.subr.mxu0 0.0
    %858 = vmatpush1.msra.mxu0 0.0
    %859 = vmatprep.subr.mxu0 0.0
    %860 = vmatpush1.msra.mxu0 0.0
    %861 = vmatprep.subr.mxu0 0.0
    %862 = vmatpush1.msra.mxu0 0.0
    %863 = vmatprep.subr.mxu0 0.0
    %864 = vmatpush1.msra.mxu0 0.0
    %865 = vmatprep.subr.mxu0 0.0
    %866 = vmatpush1.msra.mxu0 0.0
    %867 = vmatprep.subr.mxu0 0.0
    %868 = vmatpush1.msra.mxu0 %v792
    %869 = vmatprep.subr.mxu0 0.0
    %870 = vmatpush1.msra.mxu0 %v791
    %871 = vmatprep.subr.mxu0 0.0
    %872 = vmatpush2.msra.mxu0 0.0
    %873 = vmatprep.subr.mxu0 0.0
    %874 = vmatpush2.msra.mxu0 0.0
    %875 = vmatprep.subr.mxu0 0.0
    %876 = vmatpush2.msra.mxu0 0.0
    %877 = vmatprep.subr.mxu0 0.0
    %878 = vmatpush2.msra.mxu0 0.0
    %879 = vmatprep.subr.mxu0 0.0
    %880 = vmatpush2.msra.mxu0 0.0
    %881 = vmatprep.subr.mxu0 0.0
    %882 = vmatpush2.msra.mxu0 0.0
    %883 = vmatprep.subr.mxu0 0.0
    %884 = vmatpush2.msra.mxu0 0.0
    %885 = vmatprep.subr.mxu0 0.0
    %886 = vmatpush2.msra.mxu0 0.0
    %887 = vmatprep.subr.mxu0 0.0
    %888 = vmatpush2.msra.mxu0 0.0
    %889 = vmatprep.subr.mxu0 0.0
    %890 = vmatpush2.msra.mxu0 0.0
    %891 = vmatprep.subr.mxu0 0.0
    %892 = vmatpush2.msra.mxu0 0.0
    %893 = vmatprep.subr.mxu0 0.0
    %894 = vmatpush2.msra.mxu0 0.0
    %895 = vmatprep.subr.mxu0 0.0
    %896 = vmatpush2.msra.mxu0 0.0
    %897 = vmatprep.subr.mxu0 0.0
    %898 = vmatpush2.msra.mxu0 0.0
    %899 = vmatprep.subr.mxu0 0.0
    %900 = vmatpush2.msra.mxu0 0.0
    %901 = vmatprep.subr.mxu0 0.0
    %902 = vmatpush2.msra.mxu0 0.0
    %903 = vmatprep.mubr.f32.mxu0 0.0
    %904 = vmatmul.mubr.f32.gmra.mxu0 %v804
    %v905 = vpop.f32.mrf.mxu0
    %v906 = vadd.f32 %v800, %v905
    %v907 = vpop.f32.mrf.mxu0
    %908 = vmatprep.mubr.f32.mxu0 0.0
    %909 = vmatmul.mubr.f32.gmra.mxu0 %v807
    %v910 = vpop.f32.mrf.mxu0
    %v911 = vadd.f32 %v800, %v910
    %v912 = vpop.f32.mrf.mxu0
    %913 = vmatprep.mubr.f32.mxu0 0.0
    %914 = vmatmul.mubr.f32.gmra.mxu0 %v810
    %v915 = vpop.f32.mrf.mxu0
    %v916 = vadd.f32 %v800, %v915
    %v917 = vpop.f32.mrf.mxu0
    %918 = vmatprep.mubr.f32.mxu0 0.0
    %919 = vmatmul.mubr.f32.gmra.mxu0 %v813
    %v920 = vpop.f32.mrf.mxu0
    %v921 = vadd.f32 %v800, %v920
    %v922 = vpop.f32.mrf.mxu0
    %923 = vmatprep.mubr.f32.mxu0 0.0
    %924 = vmatmul.mubr.f32.gmra.mxu0 %v816
    %v925 = vpop.f32.mrf.mxu0
    %v926 = vadd.f32 %v800, %v925
    %v927 = vpop.f32.mrf.mxu0
    %928 = vmatprep.mubr.f32.mxu0 0.0
    %929 = vmatmul.mubr.f32.gmra.mxu0 %v819
    %v930 = vpop.f32.mrf.mxu0
    %v931 = vadd.f32 %v800, %v930
    %v932 = vpop.f32.mrf.mxu0
    %933 = vmatprep.mubr.f32.mxu0 0.0
    %934 = vmatmul.mubr.f32.gmra.mxu0 %v822
    %v935 = vpop.f32.mrf.mxu0
    %v936 = vadd.f32 %v800, %v935
    %v937 = vpop.f32.mrf.mxu0
    %938 = vmatprep.mubr.f32.mxu0 0.0
    %939 = vmatmul.mubr.f32.gmra.mxu0 %v825
    %v940 = vpop.f32.mrf.mxu0
    %v941 = vadd.f32 %v800, %v940
    %v942 = vpop.f32.mrf.mxu0
    %943 = vmatprep.mubr.f32.mxu0 0.0
    %944 = vmatmul.mubr.f32.gmra.mxu0 %v828
    %v945 = vpop.f32.mrf.mxu0
    %v946 = vadd.f32 %v800, %v945
    %v947 = vpop.f32.mrf.mxu0
    %948 = vmatprep.mubr.f32.mxu0 0.0
    %949 = vmatmul.mubr.f32.gmra.mxu0 %v831
    %v950 = vpop.f32.mrf.mxu0
    %v951 = vadd.f32 %v800, %v950
    %v952 = vpop.f32.mrf.mxu0
    %953 = vmatprep.mubr.f32.mxu0 0.0
    %954 = vmatmul.mubr.f32.gmra.mxu0 %v834
    %v955 = vpop.f32.mrf.mxu0
    %v956 = vadd.f32 %v800, %v955
    %v957 = vpop.f32.mrf.mxu0
    %958 = vmatprep.mubr.f32.mxu0 0.0
    %959 = vmatmul.mubr.f32.gmra.mxu0 %v837
    %v960 = vpop.f32.mrf.mxu0
    %v961 = vadd.f32 %v800, %v960
    %v962 = vpop.f32.mrf.mxu0
    %963 = vdwg.mxu0
    %v964 = vtanh.pop %v906
    %v965 = vtanh.pop %v911
    %v966 = vtanh.pop %v916
    %v967 = vtanh.pop %v921
    %v968 = vtanh.pop %v926
    %v969 = vtanh.pop %v931
    %v970 = vtanh.pop %v936
    %v971 = vtanh.pop %v941
    %v972 = vtanh.pop %v946
    %v973 = vtanh.pop %v951
    %v974 = vtanh.pop %v956
    %v975 = vtanh.pop %v961
    %v977 = vlaneseq
    %v978 = vshrl.u32 %v977, 7
    %v979 = vsub.s32 0, %v978
    %v980 = vrot.slane %v794, %v979
    %v982 = vmul.f32 %v964, %v980
    %v983 = vmul.f32 %v965, %v980
    %v984 = vmul.f32 %v966, %v980
    %v985 = vmul.f32 %v967, %v980
    %v986 = vmul.f32 %v968, %v980
    %v987 = vmul.f32 %v969, %v980
    %v988 = vmul.f32 %v970, %v980
    %v989 = vmul.f32 %v971, %v980
    %v990 = vmul.f32 %v972, %v980
    %v991 = vmul.f32 %v973, %v980
    %v992 = vmul.f32 %v974, %v980
    %v993 = vmul.f32 %v975, %v980
    %v994 = vsel %vm802, %v982, 0.0
    %995 = vadd.xlane.f32.xlu0 %v994
    %v996 = vpop.xlane.xlu0 %995
    %v997 = vsel %vm802, %v983, 0.0
    %998 = vadd.xlane.f32.xlu0 %v997
    %v999 = vpop.xlane.xlu0 %998
    %v1000 = vsel %vm802, %v984, 0.0
    %1001 = vadd.xlane.f32.xlu0 %v1000
    %v1002 = vpop.xlane.xlu0 %1001
    %v1003 = vsel %vm802, %v985, 0.0
    %1004 = vadd.xlane.f32.xlu0 %v1003
    %v1005 = vpop.xlane.xlu0 %1004
    %v1006 = vsel %vm802, %v986, 0.0
    %1007 = vadd.xlane.f32.xlu0 %v1006
    %v1008 = vpop.xlane.xlu0 %1007
    %v1009 = vsel %vm802, %v987, 0.0
    %1010 = vadd.xlane.f32.xlu0 %v1009
    %v1011 = vpop.xlane.xlu0 %1010
    %v1012 = vsel %vm802, %v988, 0.0
    %1013 = vadd.xlane.f32.xlu0 %v1012
    %v1014 = vpop.xlane.xlu0 %1013
    %v1015 = vsel %vm802, %v989, 0.0
    %1016 = vadd.xlane.f32.xlu0 %v1015
    %v1017 = vpop.xlane.xlu0 %1016
    %v1018 = vsel %vm802, %v990, 0.0
    %1019 = vadd.xlane.f32.xlu0 %v1018
    %v1020 = vpop.xlane.xlu0 %1019
    %v1021 = vsel %vm802, %v991, 0.0
    %1022 = vadd.xlane.f32.xlu0 %v1021
    %v1023 = vpop.xlane.xlu0 %1022
    %v1024 = vsel %vm802, %v992, 0.0
    %1025 = vadd.xlane.f32.xlu0 %v1024
    %v1026 = vpop.xlane.xlu0 %1025
    %v1027 = vsel %vm802, %v993, 0.0
    %1028 = vadd.xlane.f32.xlu0 %v1027
    %v1029 = vpop.xlane.xlu0 %1028
    %v1031 = vlaneseq
    %v1032 = vshrl.u32 %v1031, 7
    %v1033 = vsub.s32 0, %v1032
    %v1034 = vrot.slane %v795, %v1033
    %v1036 = vadd.f32 %v996, %v1034
    %v1037 = vadd.f32 %v999, %v1034
    %v1038 = vadd.f32 %v1002, %v1034
    %v1039 = vadd.f32 %v1005, %v1034
    %v1040 = vadd.f32 %v1008, %v1034
    %v1041 = vadd.f32 %v1011, %v1034
    %v1042 = vadd.f32 %v1014, %v1034
    %v1043 = vadd.f32 %v1017, %v1034
    %v1044 = vadd.f32 %v1020, %v1034
    %v1045 = vadd.f32 %v1023, %v1034
    %v1046 = vadd.f32 %v1026, %v1034
    %v1047 = vadd.f32 %v1029, %v1034
    %v1048 = vlaneseq
    %v1049 = vshrl.u32 %v1048, 7
    %v1050 = vadd.s32 %v1049, 8
    %v1051 = vlaneseq
    %v1052 = vshrl.u32 %v1051, 7
    %v1053 = vsub.s32 0, %v1052
    %v1054 = vrot.slane %v785, %v1053
    %v1055 = vlaneseq
    %v1056 = vshrl.u32 %v1055, 7
    %v1057 = vsub.s32 0, %v1056
    %v1058 = vrot.slane %v786, %v1057
    %v1059 = vlaneseq
    %v1060 = vshrl.u32 %v1059, 7
    %v1061 = vsub.s32 0, %v1060
    %v1062 = vrot.slane %v787, %v1061
    %v1063 = vlaneseq
    %v1064 = vshrl.u32 %v1063, 7
    %v1065 = vsub.s32 0, %v1064
    %v1066 = vrot.slane %v788, %v1065
    %v1067 = vlaneseq
    %v1068 = vshrl.u32 %v1067, 7
    %v1069 = vsub.s32 0, %v1068
    %v1070 = vrot.slane %v789, %v1069
    %v1071 = vlaneseq
    %v1072 = vshrl.u32 %v1071, 7
    %v1073 = vsub.s32 0, %v1072
    %v1074 = vrot.slane %v790, %v1073
    %vm1075 = vcmp.lt.s32.totalorder %v1049, %v1054
    %vm1076 = vcmp.lt.s32.totalorder %v1050, %v1054
    %vm1077 = vcmp.lt.s32.totalorder %v1049, %v1058
    %vm1078 = vcmp.lt.s32.totalorder %v1050, %v1058
    %vm1079 = vcmp.lt.s32.totalorder %v1049, %v1062
    %vm1080 = vcmp.lt.s32.totalorder %v1050, %v1062
    %vm1081 = vcmp.lt.s32.totalorder %v1049, %v1066
    %vm1082 = vcmp.lt.s32.totalorder %v1050, %v1066
    %vm1083 = vcmp.lt.s32.totalorder %v1049, %v1070
    %vm1084 = vcmp.lt.s32.totalorder %v1050, %v1070
    %vm1085 = vcmp.lt.s32.totalorder %v1049, %v1074
    %vm1086 = vcmp.lt.s32.totalorder %v1050, %v1074
    %v1087 = vsel %vm1075, %v1036, -1e+30
    %v1088 = vsel %vm1076, %v1037, -1e+30
    %v1089 = vsel %vm1077, %v1038, -1e+30
    %v1090 = vsel %vm1078, %v1039, -1e+30
    %v1091 = vsel %vm1079, %v1040, -1e+30
    %v1092 = vsel %vm1080, %v1041, -1e+30
    %v1093 = vsel %vm1081, %v1042, -1e+30
    %v1094 = vsel %vm1082, %v1043, -1e+30
    %v1095 = vsel %vm1083, %v1044, -1e+30
    %v1096 = vsel %vm1084, %v1045, -1e+30
    %v1097 = vsel %vm1085, %v1046, -1e+30
    %v1098 = vsel %vm1086, %v1047, -1e+30
    %vm1099 = vcmask 7168
    %v1100 = vsel %vm1099, %v1087, -inf
    %v1101 = vsel %vm1099, %v1088, -inf
    %v1102 = vmax.f32 %v1100, %v1101
    %v1103 = vrot.slane %v1102, 4
    %v1104 = vmax.f32 %v1102, %v1103
    %v1105 = vrot.slane %v1104, 2
    %v1106 = vmax.f32 %v1104, %v1105
    %v1107 = vrot.slane %v1106, 1
    %v1108 = vmax.f32 %v1106, %v1107
    %v1109 = vsel %vm1099, %v1089, -inf
    %v1110 = vsel %vm1099, %v1090, -inf
    %v1111 = vmax.f32 %v1109, %v1110
    %v1112 = vrot.slane %v1111, 4
    %v1113 = vmax.f32 %v1111, %v1112
    %v1114 = vrot.slane %v1113, 2
    %v1115 = vmax.f32 %v1113, %v1114
    %v1116 = vrot.slane %v1115, 1
    %v1117 = vmax.f32 %v1115, %v1116
    %v1118 = vsel %vm1099, %v1091, -inf
    %v1119 = vsel %vm1099, %v1092, -inf
    %v1120 = vmax.f32 %v1118, %v1119
    %v1121 = vrot.slane %v1120, 4
    %v1122 = vmax.f32 %v1120, %v1121
    %v1123 = vrot.slane %v1122, 2
    %v1124 = vmax.f32 %v1122, %v1123
    %v1125 = vrot.slane %v1124, 1
    %v1126 = vmax.f32 %v1124, %v1125
    %v1127 = vsel %vm1099, %v1093, -inf
    %v1128 = vsel %vm1099, %v1094, -inf
    %v1129 = vmax.f32 %v1127, %v1128
    %v1130 = vrot.slane %v1129, 4
    %v1131 = vmax.f32 %v1129, %v1130
    %v1132 = vrot.slane %v1131, 2
    %v1133 = vmax.f32 %v1131, %v1132
    %v1134 = vrot.slane %v1133, 1
    %v1135 = vmax.f32 %v1133, %v1134
    %v1136 = vsel %vm1099, %v1095, -inf
    %v1137 = vsel %vm1099, %v1096, -inf
    %v1138 = vmax.f32 %v1136, %v1137
    %v1139 = vrot.slane %v1138, 4
    %v1140 = vmax.f32 %v1138, %v1139
    %v1141 = vrot.slane %v1140, 2
    %v1142 = vmax.f32 %v1140, %v1141
    %v1143 = vrot.slane %v1142, 1
    %v1144 = vmax.f32 %v1142, %v1143
    %v1145 = vsel %vm1099, %v1097, -inf
    %v1146 = vsel %vm1099, %v1098, -inf
    %v1147 = vmax.f32 %v1145, %v1146
    %v1148 = vrot.slane %v1147, 4
    %v1149 = vmax.f32 %v1147, %v1148
    %v1150 = vrot.slane %v1149, 2
    %v1151 = vmax.f32 %v1149, %v1150
    %v1152 = vrot.slane %v1151, 1
    %v1153 = vmax.f32 %v1151, %v1152
    %v1154 = vsub.f32 %v1036, %v1108
    %v1155 = vsub.f32 %v1037, %v1108
    %v1156 = vsub.f32 %v1038, %v1117
    %v1157 = vsub.f32 %v1039, %v1117
    %v1158 = vsub.f32 %v1040, %v1126
    %v1159 = vsub.f32 %v1041, %v1126
    %v1160 = vsub.f32 %v1042, %v1135
    %v1161 = vsub.f32 %v1043, %v1135
    %v1162 = vsub.f32 %v1044, %v1144
    %v1163 = vsub.f32 %v1045, %v1144
    %v1164 = vsub.f32 %v1046, %v1153
    %v1165 = vsub.f32 %v1047, %v1153
    %v1166 = vmul.f32 %v1154, 1.442695
    %v1167 = vpow.pop %v1166
    %v1168 = vmul.f32 %v1155, 1.442695
    %v1169 = vpow.pop %v1168
    %v1170 = vmul.f32 %v1156, 1.442695
    %v1171 = vpow.pop %v1170
    %v1172 = vmul.f32 %v1157, 1.442695
    %v1173 = vpow.pop %v1172
    %v1174 = vmul.f32 %v1158, 1.442695
    %v1175 = vpow.pop %v1174
    %v1176 = vmul.f32 %v1159, 1.442695
    %v1177 = vpow.pop %v1176
    %v1178 = vmul.f32 %v1160, 1.442695
    %v1179 = vpow.pop %v1178
    %v1180 = vmul.f32 %v1161, 1.442695
    %v1181 = vpow.pop %v1180
    %v1182 = vmul.f32 %v1162, 1.442695
    %v1183 = vpow.pop %v1182
    %v1184 = vmul.f32 %v1163, 1.442695
    %v1185 = vpow.pop %v1184
    %v1186 = vmul.f32 %v1164, 1.442695
    %v1187 = vpow.pop %v1186
    %v1188 = vmul.f32 %v1165, 1.442695
    %v1189 = vpow.pop %v1188
    %v1190 = vsel %vm1075, %v1167, 0.0
    %v1191 = vsel %vm1076, %v1169, 0.0
    %v1192 = vsel %vm1077, %v1171, 0.0
    %v1193 = vsel %vm1078, %v1173, 0.0
    %v1194 = vsel %vm1079, %v1175, 0.0
    %v1195 = vsel %vm1080, %v1177, 0.0
    %v1196 = vsel %vm1081, %v1179, 0.0
    %v1197 = vsel %vm1082, %v1181, 0.0
    %v1198 = vsel %vm1083, %v1183, 0.0
    %v1199 = vsel %vm1084, %v1185, 0.0
    %v1200 = vsel %vm1085, %v1187, 0.0
    %v1201 = vsel %vm1086, %v1189, 0.0
    %v1202 = vsel %vm1099, %v1190, 0.0
    %v1203 = vsel %vm1099, %v1191, 0.0
    %v1204 = vadd.f32 %v1202, %v1203
    %v1205 = vrot.slane %v1204, 4
    %v1206 = vadd.f32 %v1204, %v1205
    %v1207 = vrot.slane %v1206, 2
    %v1208 = vadd.f32 %v1206, %v1207
    %v1209 = vrot.slane %v1208, 1
    %v1210 = vadd.f32 %v1208, %v1209
    %v1211 = vsel %vm1099, %v1192, 0.0
    %v1212 = vsel %vm1099, %v1193, 0.0
    %v1213 = vadd.f32 %v1211, %v1212
    %v1214 = vrot.slane %v1213, 4
    %v1215 = vadd.f32 %v1213, %v1214
    %v1216 = vrot.slane %v1215, 2
    %v1217 = vadd.f32 %v1215, %v1216
    %v1218 = vrot.slane %v1217, 1
    %v1219 = vadd.f32 %v1217, %v1218
    %v1220 = vsel %vm1099, %v1194, 0.0
    %v1221 = vsel %vm1099, %v1195, 0.0
    %v1222 = vadd.f32 %v1220, %v1221
    %v1223 = vrot.slane %v1222, 4
    %v1224 = vadd.f32 %v1222, %v1223
    %v1225 = vrot.slane %v1224, 2
    %v1226 = vadd.f32 %v1224, %v1225
    %v1227 = vrot.slane %v1226, 1
    %v1228 = vadd.f32 %v1226, %v1227
    %v1229 = vsel %vm1099, %v1196, 0.0
    %v1230 = vsel %vm1099, %v1197, 0.0
    %v1231 = vadd.f32 %v1229, %v1230
    %v1232 = vrot.slane %v1231, 4
    %v1233 = vadd.f32 %v1231, %v1232
    %v1234 = vrot.slane %v1233, 2
    %v1235 = vadd.f32 %v1233, %v1234
    %v1236 = vrot.slane %v1235, 1
    %v1237 = vadd.f32 %v1235, %v1236
    %v1238 = vsel %vm1099, %v1198, 0.0
    %v1239 = vsel %vm1099, %v1199, 0.0
    %v1240 = vadd.f32 %v1238, %v1239
    %v1241 = vrot.slane %v1240, 4
    %v1242 = vadd.f32 %v1240, %v1241
    %v1243 = vrot.slane %v1242, 2
    %v1244 = vadd.f32 %v1242, %v1243
    %v1245 = vrot.slane %v1244, 1
    %v1246 = vadd.f32 %v1244, %v1245
    %v1247 = vsel %vm1099, %v1200, 0.0
    %v1248 = vsel %vm1099, %v1201, 0.0
    %v1249 = vadd.f32 %v1247, %v1248
    %v1250 = vrot.slane %v1249, 4
    %v1251 = vadd.f32 %v1249, %v1250
    %v1252 = vrot.slane %v1251, 2
    %v1253 = vadd.f32 %v1251, %v1252
    %v1254 = vrot.slane %v1253, 1
    %v1255 = vadd.f32 %v1253, %v1254
    %v1256 = vrcp.pop %v1210
    %v1257 = vrcp.pop %v1219
    %v1258 = vrcp.pop %v1228
    %v1259 = vrcp.pop %v1237
    %v1260 = vrcp.pop %v1246
    %v1261 = vrcp.pop %v1255
    %v1262 = vmul.f32 %v1190, %v1256
    %v1263 = vmul.f32 %v1191, %v1256
    %v1264 = vmul.f32 %v1192, %v1257
    %v1265 = vmul.f32 %v1193, %v1257
    %v1266 = vmul.f32 %v1194, %v1258
    %v1267 = vmul.f32 %v1195, %v1258
    %v1268 = vmul.f32 %v1196, %v1259
    %v1269 = vmul.f32 %v1197, %v1259
    %v1270 = vmul.f32 %v1198, %v1260
    %v1271 = vmul.f32 %v1199, %v1260
    %v1272 = vmul.f32 %v1200, %v1261
    %v1273 = vmul.f32 %v1201, %v1261
    %1275 = vset.pattern.permute.xlu0 0
    %1276 = vperm.xlu0 %1275, %v1262
    %v1277 = vpop.permute.xlu0 %1276
    %1280 = vset.pattern.permute.xlu0 0
    %1281 = vperm.xlu0 %1280, %v1263
    %v1282 = vpop.permute.xlu0 %1281
    %1285 = vset.pattern.permute.xlu0 0
    %1286 = vperm.xlu0 %1285, %v1264
    %v1287 = vpop.permute.xlu0 %1286
    %1290 = vset.pattern.permute.xlu0 0
    %1291 = vperm.xlu0 %1290, %v1265
    %v1292 = vpop.permute.xlu0 %1291
    %1295 = vset.pattern.permute.xlu0 0
    %1296 = vperm.xlu0 %1295, %v1266
    %v1297 = vpop.permute.xlu0 %1296
    %1300 = vset.pattern.permute.xlu0 0
    %1301 = vperm.xlu0 %1300, %v1267
    %v1302 = vpop.permute.xlu0 %1301
    %1305 = vset.pattern.permute.xlu0 0
    %1306 = vperm.xlu0 %1305, %v1268
    %v1307 = vpop.permute.xlu0 %1306
    %1310 = vset.pattern.permute.xlu0 0
    %1311 = vperm.xlu0 %1310, %v1269
    %v1312 = vpop.permute.xlu0 %1311
    %1315 = vset.pattern.permute.xlu0 0
    %1316 = vperm.xlu0 %1315, %v1270
    %v1317 = vpop.permute.xlu0 %1316
    %1320 = vset.pattern.permute.xlu0 0
    %1321 = vperm.xlu0 %1320, %v1271
    %v1322 = vpop.permute.xlu0 %1321
    %1325 = vset.pattern.permute.xlu0 0
    %1326 = vperm.xlu0 %1325, %v1272
    %v1327 = vpop.permute.xlu0 %1326
    %1330 = vset.pattern.permute.xlu0 0
    %1331 = vperm.xlu0 %1330, %v1273
    %v1332 = vpop.permute.xlu0 %1331
    %v1334 = vmul.f32 %v1277, %v727
    %v1335 = vmul.f32 %v1282, %v732
    %v1336 = vmul.f32 %v1287, %v737
    %v1337 = vmul.f32 %v1292, %v742
    %v1338 = vmul.f32 %v1297, %v747
    %v1339 = vmul.f32 %v1302, %v752
    %v1340 = vmul.f32 %v1307, %v757
    %v1341 = vmul.f32 %v1312, %v762
    %v1342 = vmul.f32 %v1317, %v767
    %v1343 = vmul.f32 %v1322, %v772
    %v1344 = vmul.f32 %v1327, %v777
    %v1345 = vmul.f32 %v1332, %v782
    %v1346 = vsel %vm802, %v1334, 0.0
    %v1347 = vsel %vm802, %v1335, 0.0
    %v1348 = vadd.f32 %v1346, %v1347
    %v1349 = vrot.slane %v1348, 4
    %v1350 = vadd.f32 %v1348, %v1349
    %v1351 = vrot.slane %v1350, 2
    %v1352 = vadd.f32 %v1350, %v1351
    %v1353 = vrot.slane %v1352, 1
    %v1354 = vadd.f32 %v1352, %v1353
    %v1355 = vsel %vm802, %v1336, 0.0
    %v1356 = vsel %vm802, %v1337, 0.0
    %v1357 = vadd.f32 %v1355, %v1356
    %v1358 = vrot.slane %v1357, 4
    %v1359 = vadd.f32 %v1357, %v1358
    %v1360 = vrot.slane %v1359, 2
    %v1361 = vadd.f32 %v1359, %v1360
    %v1362 = vrot.slane %v1361, 1
    %v1363 = vadd.f32 %v1361, %v1362
    %v1364 = vsel %vm802, %v1338, 0.0
    %v1365 = vsel %vm802, %v1339, 0.0
    %v1366 = vadd.f32 %v1364, %v1365
    %v1367 = vrot.slane %v1366, 4
    %v1368 = vadd.f32 %v1366, %v1367
    %v1369 = vrot.slane %v1368, 2
    %v1370 = vadd.f32 %v1368, %v1369
    %v1371 = vrot.slane %v1370, 1
    %v1372 = vadd.f32 %v1370, %v1371
    %v1373 = vsel %vm802, %v1340, 0.0
    %v1374 = vsel %vm802, %v1341, 0.0
    %v1375 = vadd.f32 %v1373, %v1374
    %v1376 = vrot.slane %v1375, 4
    %v1377 = vadd.f32 %v1375, %v1376
    %v1378 = vrot.slane %v1377, 2
    %v1379 = vadd.f32 %v1377, %v1378
    %v1380 = vrot.slane %v1379, 1
    %v1381 = vadd.f32 %v1379, %v1380
    %v1382 = vsel %vm802, %v1342, 0.0
    %v1383 = vsel %vm802, %v1343, 0.0
    %v1384 = vadd.f32 %v1382, %v1383
    %v1385 = vrot.slane %v1384, 4
    %v1386 = vadd.f32 %v1384, %v1385
    %v1387 = vrot.slane %v1386, 2
    %v1388 = vadd.f32 %v1386, %v1387
    %v1389 = vrot.slane %v1388, 1
    %v1390 = vadd.f32 %v1388, %v1389
    %v1391 = vsel %vm802, %v1344, 0.0
    %v1392 = vsel %vm802, %v1345, 0.0
    %v1393 = vadd.f32 %v1391, %v1392
    %v1394 = vrot.slane %v1393, 4
    %v1395 = vadd.f32 %v1393, %v1394
    %v1396 = vrot.slane %v1395, 2
    %v1397 = vadd.f32 %v1395, %v1396
    %v1398 = vrot.slane %v1397, 1
    %v1399 = vadd.f32 %v1397, %v1398
    %1400 = vst.msk [vmem:[%s20] sm:$0xff] %vm1099, %v1262
    %1401 = vst.msk [vmem:[%s20 + $0x8] sm:$0xff] %vm1099, %v1263
    %1402 = vst.msk [vmem:[%s20 + $0x10] sm:$0xff] %vm1099, %v1264
    %1403 = vst.msk [vmem:[%s20 + $0x18] sm:$0xff] %vm1099, %v1265
    %1404 = vst.msk [vmem:[%s20 + $0x20] sm:$0xff] %vm1099, %v1266
    %1405 = vst.msk [vmem:[%s20 + $0x28] sm:$0xff] %vm1099, %v1267
    %1406 = vst.msk [vmem:[%s20 + $0x30] sm:$0xff] %vm1099, %v1268
    %1407 = vst.msk [vmem:[%s20 + $0x38] sm:$0xff] %vm1099, %v1269
    %1408 = vst.msk [vmem:[%s20 + $0x40] sm:$0xff] %vm1099, %v1270
    %1409 = vst.msk [vmem:[%s20 + $0x48] sm:$0xff] %vm1099, %v1271
    %1410 = vst.msk [vmem:[%s20 + $0x50] sm:$0xff] %vm1099, %v1272
    %1411 = vst.msk [vmem:[%s20 + $0x58] sm:$0xff] %vm1099, %v1273
    %v1412 = vld [vmem:[%s2] sm:$0xff]
    %v1413 = vld [vmem:[%s2 + $0x8] sm:$0xff]
    %v1414 = vadd.s32 %v71, 1
    %1415 = vset.pattern.permute.xlu0 0
    %1416 = vperm.xlu0 %1415, %v1412
    %v1417 = vpop.permute.xlu0 %1416
    %1418 = vset.pattern.permute.xlu0 0
    %1419 = vperm.xlu0 %1418, %v1413
    %v1420 = vpop.permute.xlu0 %1419
    %vm1421 = vcmp.eq.s32.totalorder %v1417, %v1414
    %vm1422 = vcmp.eq.s32.totalorder %v1420, %v1414
    %v1423 = vsel %vm1421, 1, 0
    %v1424 = vsel %vm1422, 1, 0
    %v1425 = vcvt.s32.f32 %v1423
    %v1426 = vcvt.s32.f32 %v1424
    %vm1433 = vcmask 1041409
    %v1434 = vsel %vm1433, %v1363, %v1354
    %vm1435 = vcmask 1042434
    %v1436 = vsel %vm1435, %v1372, %v1434
    %vm1437 = vcmask 1043459
    %v1438 = vsel %vm1437, %v1381, %v1436
    %vm1439 = vcmask 1044484
    %v1440 = vsel %vm1439, %v1390, %v1438
    %vm1441 = vcmask 1045509
    %v1442 = vsel %vm1441, %v1399, %v1440
    %vm1443 = vcmask 48128
    %v1445 = vsel %vm1443, %v1425, 0
    %v1448 = vsel %vm1443, %v1426, 0
    %vm1450 = vcmask 1045504
    %v1451 = vsel %vm1450, %v1442, 0
    %1453 = vmatprep.subr.mxu0 0.0
    %1454 = vmatpush1.msra.mxu0 0.0
    %1455 = vmatprep.subr.mxu0 0.0
    %1456 = vmatpush1.msra.mxu0 0.0
    %1457 = vmatprep.subr.mxu0 0.0
    %1458 = vmatpush1.msra.mxu0 0.0
    %1459 = vmatprep.subr.mxu0 0.0
    %1460 = vmatpush1.msra.mxu0 0.0
    %1461 = vmatprep.subr.mxu0 0.0
    %1462 = vmatpush1.msra.mxu0 0.0
    %1463 = vmatprep.subr.mxu0 0.0
    %1464 = vmatpush1.msra.mxu0 0.0
    %1465 = vmatprep.subr.mxu0 0.0
    %1466 = vmatpush1.msra.mxu0 0.0
    %1467 = vmatprep.subr.mxu0 0.0
    %1468 = vmatpush1.msra.mxu0 0.0
    %1469 = vmatprep.subr.mxu0 0.0
    %1470 = vmatpush1.msra.mxu0 0.0
    %1471 = vmatprep.subr.mxu0 0.0
    %1472 = vmatpush1.msra.mxu0 0.0
    %1473 = vmatprep.subr.mxu0 0.0
    %1474 = vmatpush1.msra.mxu0 0.0
    %1475 = vmatprep.subr.mxu0 0.0
    %1476 = vmatpush1.msra.mxu0 0.0
    %1477 = vmatprep.subr.mxu0 0.0
    %1478 = vmatpush1.msra.mxu0 0.0
    %1479 = vmatprep.subr.mxu0 0.0
    %1480 = vmatpush1.msra.mxu0 0.0
    %1481 = vmatprep.subr.mxu0 0.0
    %1482 = vmatpush1.msra.mxu0 0.0
    %1483 = vmatprep.subr.mxu0 0.0
    %1484 = vmatpush1.msra.mxu0 %v1451
    %1485 = vmatprep.subr.mxu0 0.0
    %1486 = vmatpush2.msra.mxu0 0.0
    %1487 = vmatprep.subr.mxu0 0.0
    %1488 = vmatpush2.msra.mxu0 0.0
    %1489 = vmatprep.subr.mxu0 0.0
    %1490 = vmatpush2.msra.mxu0 0.0
    %1491 = vmatprep.subr.mxu0 0.0
    %1492 = vmatpush2.msra.mxu0 0.0
    %1493 = vmatprep.subr.mxu0 0.0
    %1494 = vmatpush2.msra.mxu0 0.0
    %1495 = vmatprep.subr.mxu0 0.0
    %1496 = vmatpush2.msra.mxu0 0.0
    %1497 = vmatprep.subr.mxu0 0.0
    %1498 = vmatpush2.msra.mxu0 0.0
    %1499 = vmatprep.subr.mxu0 0.0
    %1500 = vmatpush2.msra.mxu0 0.0
    %1501 = vmatprep.subr.mxu0 0.0
    %1502 = vmatpush2.msra.mxu0 0.0
    %1503 = vmatprep.subr.mxu0 0.0
    %1504 = vmatpush2.msra.mxu0 0.0
    %1505 = vmatprep.subr.mxu0 0.0
    %1506 = vmatpush2.msra.mxu0 0.0
    %1507 = vmatprep.subr.mxu0 0.0
    %1508 = vmatpush2.msra.mxu0 0.0
    %1509 = vmatprep.subr.mxu0 0.0
    %1510 = vmatpush2.msra.mxu0 0.0
    %1511 = vmatprep.subr.mxu0 0.0
    %1512 = vmatpush2.msra.mxu0 0.0
    %1513 = vmatprep.subr.mxu0 0.0
    %1514 = vmatpush2.msra.mxu0 0.0
    %1515 = vmatprep.subr.mxu0 0.0
    %1516 = vmatpush2.msra.mxu0 0.0
    %1517 = vmatprep.mubr.f32.mxu0 0.0
    %1518 = vmatmul.mubr.f32.gmra.mxu0 %v1445
    %v1519 = vpop.f32.mrf.mxu0
    %v1520 = vadd.f32 0.0, %v1519
    %v1521 = vpop.f32.mrf.mxu0
    %1522 = vmatprep.mubr.f32.mxu0 0.0
    %1523 = vmatmul.mubr.f32.gmra.mxu0 %v1448
    %v1524 = vpop.f32.mrf.mxu0
    %v1525 = vadd.f32 0.0, %v1524
    %v1526 = vpop.f32.mrf.mxu0
    %1527 = vdwg.mxu0
    %v1528 = vld [vmem:[%s11] sm:$0xff]
    %v1529 = vld [vmem:[%s11 + $0x8] sm:$0xff]
    %v1530 = vld [vmem:[%s11 + $0x10] sm:$0xff]
    %v1531 = vld [vmem:[%s11 + $0x18] sm:$0xff]
    %v1532 = vld [vmem:[%s11 + $0x20] sm:$0xff]
    %v1533 = vld [vmem:[%s11 + $0x28] sm:$0xff]
    %v1534 = vld [vmem:[%s11 + $0x30] sm:$0xff]
    %v1535 = vld [vmem:[%s11 + $0x38] sm:$0xff]
    %v1536 = vld [vmem:[%s11 + $0x40] sm:$0xff]
    %v1537 = vld [vmem:[%s11 + $0x48] sm:$0xff]
    %v1538 = vld [vmem:[%s12] sm:$0x1]
    %vm1539 = vcmask 123904
    %1540 = vst.msk [vmem:[#allocation3] sm:$0x3] %vm1539, 0.0
    %1541 = vst.msk [vmem:[#allocation3 + $0x10] sm:$0x3] %vm1539, 0.0
    %1542 = vst.msk [vmem:[#allocation3 + $0xa] sm:$0x3] %vm1539, 0.0
    %1543 = vst.msk [vmem:[#allocation3 + $0x1a] sm:$0x3] %vm1539, 0.0
    %1544 = vst.msk [vmem:[#allocation3 + $0x2] sm:$0xff] %vm802, %v1520
    %1545 = vst.msk [vmem:[#allocation3 + $0x12] sm:$0xff] %vm802, %v1525
    %v1546 = vld [vmem:[#allocation3] sm:$0xff]
    %v1547 = vld [vmem:[#allocation3 + $0x10] sm:$0xff]
    %v1548 = vld [vmem:[#allocation3 + $0x1] sm:$0xff]
    %v1549 = vld [vmem:[#allocation3 + $0x11] sm:$0xff]
    %v1550 = vld [vmem:[#allocation3 + $0x2] sm:$0xff]
    %v1551 = vld [vmem:[#allocation3 + $0x12] sm:$0xff]
    %v1552 = vld [vmem:[#allocation3 + $0x3] sm:$0xff]
    %v1553 = vld [vmem:[#allocation3 + $0x13] sm:$0xff]
    %v1554 = vld [vmem:[#allocation3 + $0x4] sm:$0xff]
    %v1555 = vld [vmem:[#allocation3 + $0x14] sm:$0xff]
    %1558 = vrot.lane.b32.xlu0 %v1548, 16
    %v1559 = vpop.permute.xlu0 %1558
    %1560 = vrot.lane.b32.xlu0 %v1549, 16
    %v1561 = vpop.permute.xlu0 %1560
    %1566 = vrot.lane.b32.xlu0 %v1550, 32
    %v1567 = vpop.permute.xlu0 %1566
    %1568 = vrot.lane.b32.xlu0 %v1551, 32
    %v1569 = vpop.permute.xlu0 %1568
    %1574 = vrot.lane.b32.xlu0 %v1552, 48
    %v1575 = vpop.permute.xlu0 %1574
    %1576 = vrot.lane.b32.xlu0 %v1553, 48
    %v1577 = vpop.permute.xlu0 %1576
    %1582 = vrot.lane.b32.xlu0 %v1554, 64
    %v1583 = vpop.permute.xlu0 %1582
    %1584 = vrot.lane.b32.xlu0 %v1555, 64
    %v1585 = vpop.permute.xlu0 %1584
    %v1588 = vsel %vm802, %v1546, %v1559
    %v1589 = vsel %vm802, %v1547, %v1561
    %v1590 = vsel %vm363, %v1588, %v1567
    %v1591 = vsel %vm363, %v1589, %v1569
    %vm1592 = vcmask 392192
    %v1593 = vsel %vm1592, %v1590, %v1575
    %v1594 = vsel %vm1592, %v1591, %v1577
    %v1595 = vsel %vm592, %v1593, %v1583
    %v1596 = vsel %vm592, %v1594, %v1585
    %v1598 = vlaneseq
    %v1599 = vshrl.u32 %v1598, 7
    %v1600 = vsub.s32 0, %v1599
    %v1601 = vrot.slane %v1538, %v1600
    %vm1603 = vcmask 654336
    %v1605 = vsel %vm1603, %v1595, 0
    %v1608 = vsel %vm1603, %v1596, 0
    %1610 = vmatprep.subr.mxu0 0.0
    %1611 = vmatpush1.msra.mxu0 0.0
    %1612 = vmatprep.subr.mxu0 0.0
    %1613 = vmatpush1.msra.mxu0 0.0
    %1614 = vmatprep.subr.mxu0 0.0
    %1615 = vmatpush1.msra.mxu0 0.0
    %1616 = vmatprep.subr.mxu0 0.0
    %1617 = vmatpush1.msra.mxu0 0.0
    %1618 = vmatprep.subr.mxu0 0.0
    %1619 = vmatpush1.msra.mxu0 0.0
    %1620 = vmatprep.subr.mxu0 0.0
    %1621 = vmatpush1.msra.mxu0 0.0
    %1622 = vmatprep.subr.mxu0 0.0
    %1623 = vmatpush1.msra.mxu0 %v1537
    %1624 = vmatprep.subr.mxu0 0.0
    %1625 = vmatpush1.msra.mxu0 %v1536
    %1626 = vmatprep.subr.mxu0 0.0
    %1627 = vmatpush1.msra.mxu0 %v1535
    %1628 = vmatprep.subr.mxu0 0.0
    %1629 = vmatpush1.msra.mxu0 %v1534
    %1630 = vmatprep.subr.mxu0 0.0
    %1631 = vmatpush1.msra.mxu0 %v1533
    %1632 = vmatprep.subr.mxu0 0.0
    %1633 = vmatpush1.msra.mxu0 %v1532
    %1634 = vmatprep.subr.mxu0 0.0
    %1635 = vmatpush1.msra.mxu0 %v1531
    %1636 = vmatprep.subr.mxu0 0.0
    %1637 = vmatpush1.msra.mxu0 %v1530
    %1638 = vmatprep.subr.mxu0 0.0
    %1639 = vmatpush1.msra.mxu0 %v1529
    %1640 = vmatprep.subr.mxu0 0.0
    %1641 = vmatpush1.msra.mxu0 %v1528
    %1642 = vmatprep.subr.mxu0 0.0
    %1643 = vmatpush2.msra.mxu0 0.0
    %1644 = vmatprep.subr.mxu0 0.0
    %1645 = vmatpush2.msra.mxu0 0.0
    %1646 = vmatprep.subr.mxu0 0.0
    %1647 = vmatpush2.msra.mxu0 0.0
    %1648 = vmatprep.subr.mxu0 0.0
    %1649 = vmatpush2.msra.mxu0 0.0
    %1650 = vmatprep.subr.mxu0 0.0
    %1651 = vmatpush2.msra.mxu0 0.0
    %1652 = vmatprep.subr.mxu0 0.0
    %1653 = vmatpush2.msra.mxu0 0.0
    %1654 = vmatprep.subr.mxu0 0.0
    %1655 = vmatpush2.msra.mxu0 0.0
    %1656 = vmatprep.subr.mxu0 0.0
    %1657 = vmatpush2.msra.mxu0 0.0
    %1658 = vmatprep.subr.mxu0 0.0
    %1659 = vmatpush2.msra.mxu0 0.0
    %1660 = vmatprep.subr.mxu0 0.0
    %1661 = vmatpush2.msra.mxu0 0.0
    %1662 = vmatprep.subr.mxu0 0.0
    %1663 = vmatpush2.msra.mxu0 0.0
    %1664 = vmatprep.subr.mxu0 0.0
    %1665 = vmatpush2.msra.mxu0 0.0
    %1666 = vmatprep.subr.mxu0 0.0
    %1667 = vmatpush2.msra.mxu0 0.0
    %1668 = vmatprep.subr.mxu0 0.0
    %1669 = vmatpush2.msra.mxu0 0.0
    %1670 = vmatprep.subr.mxu0 0.0
    %1671 = vmatpush2.msra.mxu0 0.0
    %1672 = vmatprep.subr.mxu0 0.0
    %1673 = vmatpush2.msra.mxu0 0.0
    %1674 = vmatprep.mubr.f32.mxu0 0.0
    %1675 = vmatmul.mubr.f32.gmra.mxu0 %v1605
    %v1676 = vpop.f32.mrf.mxu0
    %v1677 = vadd.f32 %v1601, %v1676
    %v1678 = vpop.f32.mrf.mxu0
    %1679 = vmatprep.mubr.f32.mxu0 0.0
    %1680 = vmatmul.mubr.f32.gmra.mxu0 %v1608
    %v1681 = vpop.f32.mrf.mxu0
    %v1682 = vadd.f32 %v1601, %v1681
    %v1683 = vpop.f32.mrf.mxu0
    %1684 = vdwg.mxu0
    %v1685 = vld [vmem:[%s3] sm:$0x1]
    %v1686 = vld [vmem:[%s3 + $0x1] sm:$0x1]
    %v1687 = vld [vmem:[%s13] sm:$0xff]
    %v1688 = vld [vmem:[%s13 + $0x8] sm:$0xff]
    %v1689 = vld [vmem:[%s14] sm:$0x1]
    %v1690 = vld [vmem:[%s15] sm:$0x1]
    %v1691 = vld [vmem:[#allocation5] sm:$0x1]
    %v1693 = vlaneseq
    %v1694 = vshrl.u32 %v1693, 7
    %v1695 = vsub.s32 0, %v1694
    %v1696 = vrot.slane %v1689, %v1695
    %v1699 = vsel %vm802, %v1677, 0
    %v1702 = vsel %vm802, %v1682, 0
    %1704 = vmatprep.subr.mxu0 0.0
    %1705 = vmatpush1.msra.mxu0 0.0
    %1706 = vmatprep.subr.mxu0 0.0
    %1707 = vmatpush1.msra.mxu0 0.0
    %1708 = vmatprep.subr.mxu0 0.0
    %1709 = vmatpush1.msra.mxu0 0.0
    %1710 = vmatprep.subr.mxu0 0.0
    %1711 = vmatpush1.msra.mxu0 0.0
    %1712 = vmatprep.subr.mxu0 0.0
    %1713 = vmatpush1.msra.mxu0 0.0
    %1714 = vmatprep.subr.mxu0 0.0
    %1715 = vmatpush1.msra.mxu0 0.0
    %1716 = vmatprep.subr.mxu0 0.0
    %1717 = vmatpush1.msra.mxu0 0.0
    %1718 = vmatprep.subr.mxu0 0.0
    %1719 = vmatpush1.msra.mxu0 0.0
    %1720 = vmatprep.subr.mxu0 0.0
    %1721 = vmatpush1.msra.mxu0 0.0
    %1722 = vmatprep.subr.mxu0 0.0
    %1723 = vmatpush1.msra.mxu0 0.0
    %1724 = vmatprep.subr.mxu0 0.0
    %1725 = vmatpush1.msra.mxu0 0.0
    %1726 = vmatprep.subr.mxu0 0.0
    %1727 = vmatpush1.msra.mxu0 0.0
    %1728 = vmatprep.subr.mxu0 0.0
    %1729 = vmatpush1.msra.mxu0 0.0
    %1730 = vmatprep.subr.mxu0 0.0
    %1731 = vmatpush1.msra.mxu0 0.0
    %1732 = vmatprep.subr.mxu0 0.0
    %1733 = vmatpush1.msra.mxu0 %v1688
    %1734 = vmatprep.subr.mxu0 0.0
    %1735 = vmatpush1.msra.mxu0 %v1687
    %1736 = vmatprep.subr.mxu0 0.0
    %1737 = vmatpush2.msra.mxu0 0.0
    %1738 = vmatprep.subr.mxu0 0.0
    %1739 = vmatpush2.msra.mxu0 0.0
    %1740 = vmatprep.subr.mxu0 0.0
    %1741 = vmatpush2.msra.mxu0 0.0
    %1742 = vmatprep.subr.mxu0 0.0
    %1743 = vmatpush2.msra.mxu0 0.0
    %1744 = vmatprep.subr.mxu0 0.0
    %1745 = vmatpush2.msra.mxu0 0.0
    %1746 = vmatprep.subr.mxu0 0.0
    %1747 = vmatpush2.msra.mxu0 0.0
    %1748 = vmatprep.subr.mxu0 0.0
    %1749 = vmatpush2.msra.mxu0 0.0
    %1750 = vmatprep.subr.mxu0 0.0
    %1751 = vmatpush2.msra.mxu0 0.0
    %1752 = vmatprep.subr.mxu0 0.0
    %1753 = vmatpush2.msra.mxu0 0.0
    %1754 = vmatprep.subr.mxu0 0.0
    %1755 = vmatpush2.msra.mxu0 0.0
    %1756 = vmatprep.subr.mxu0 0.0
    %1757 = vmatpush2.msra.mxu0 0.0
    %1758 = vmatprep.subr.mxu0 0.0
    %1759 = vmatpush2.msra.mxu0 0.0
    %1760 = vmatprep.subr.mxu0 0.0
    %1761 = vmatpush2.msra.mxu0 0.0
    %1762 = vmatprep.subr.mxu0 0.0
    %1763 = vmatpush2.msra.mxu0 0.0
    %1764 = vmatprep.subr.mxu0 0.0
    %1765 = vmatpush2.msra.mxu0 0.0
    %1766 = vmatprep.subr.mxu0 0.0
    %1767 = vmatpush2.msra.mxu0 0.0
    %1768 = vmatprep.mubr.f32.mxu0 0.0
    %1769 = vmatmul.mubr.f32.gmra.mxu0 %v1699
    %v1770 = vpop.f32.mrf.mxu0
    %v1771 = vadd.f32 %v1696, %v1770
    %v1772 = vpop.f32.mrf.mxu0
    %1773 = vmatprep.mubr.f32.mxu0 0.0
    %1774 = vmatmul.mubr.f32.gmra.mxu0 %v1702
    %v1775 = vpop.f32.mrf.mxu0
    %v1776 = vadd.f32 %v1696, %v1775
    %v1777 = vpop.f32.mrf.mxu0
    %1778 = vdwg.mxu0
    %v1779 = vtanh.pop %v1771
    %v1780 = vtanh.pop %v1776
    %v1782 = vlaneseq
    %v1783 = vshrl.u32 %v1782, 7
    %v1784 = vsub.s32 0, %v1783
    %v1785 = vrot.slane %v1690, %v1784
    %v1787 = vmul.f32 %v1779, %v1785
    %v1788 = vmul.f32 %v1780, %v1785
    %v1789 = vsel %vm802, %v1787, 0.0
    %1790 = vadd.xlane.f32.xlu0 %v1789
    %v1791 = vpop.xlane.xlu0 %1790
    %v1792 = vsel %vm802, %v1788, 0.0
    %1793 = vadd.xlane.f32.xlu0 %v1792
    %v1794 = vpop.xlane.xlu0 %1793
    %v1796 = vlaneseq
    %v1797 = vshrl.u32 %v1796, 7
    %v1798 = vsub.s32 0, %v1797
    %v1799 = vrot.slane %v1691, %v1798
    %v1801 = vadd.f32 %v1791, %v1799
    %v1802 = vadd.f32 %v1794, %v1799
    %v1803 = vlaneseq
    %v1804 = vshrl.u32 %v1803, 7
    %v1805 = vsub.s32 0, %v1804
    %v1806 = vrot.slane %v1685, %v1805
    %v1807 = vlaneseq
    %v1808 = vshrl.u32 %v1807, 7
    %v1809 = vsub.s32 0, %v1808
    %v1810 = vrot.slane %v1686, %v1809
    %vm1811 = vcmp.lt.s32.totalorder %v1049, %v1806
    %vm1812 = vcmp.lt.s32.totalorder %v1049, %v1810
    %v1813 = vsel %vm1811, %v1801, -1e+30
    %v1814 = vsel %vm1812, %v1802, -1e+30
    %v1815 = vsel %vm1099, %v1813, -inf
    %v1816 = vrot.slane %v1815, 4
    %v1817 = vmax.f32 %v1815, %v1816
    %v1818 = vrot.slane %v1817, 2
    %v1819 = vmax.f32 %v1817, %v1818
    %v1820 = vrot.slane %v1819, 1
    %v1821 = vmax.f32 %v1819, %v1820
    %v1822 = vsel %vm1099, %v1814, -inf
    %v1823 = vrot.slane %v1822, 4
    %v1824 = vmax.f32 %v1822, %v1823
    %v1825 = vrot.slane %v1824, 2
    %v1826 = vmax.f32 %v1824, %v1825
    %v1827 = vrot.slane %v1826, 1
    %v1828 = vmax.f32 %v1826, %v1827
    %v1829 = vsub.f32 %v1801, %v1821
    %v1830 = vsub.f32 %v1802, %v1828
    %v1831 = vmul.f32 %v1829, 1.442695
    %v1832 = vpow.pop %v1831
    %v1833 = vmul.f32 %v1830, 1.442695
    %v1834 = vpow.pop %v1833
    %v1835 = vsel %vm1811, %v1832, 0.0
    %v1836 = vsel %vm1812, %v1834, 0.0
    %v1837 = vsel %vm1099, %v1835, 0.0
    %v1838 = vrot.slane %v1837, 4
    %v1839 = vadd.f32 %v1837, %v1838
    %v1840 = vrot.slane %v1839, 2
    %v1841 = vadd.f32 %v1839, %v1840
    %v1842 = vrot.slane %v1841, 1
    %v1843 = vadd.f32 %v1841, %v1842
    %v1844 = vsel %vm1099, %v1836, 0.0
    %v1845 = vrot.slane %v1844, 4
    %v1846 = vadd.f32 %v1844, %v1845
    %v1847 = vrot.slane %v1846, 2
    %v1848 = vadd.f32 %v1846, %v1847
    %v1849 = vrot.slane %v1848, 1
    %v1850 = vadd.f32 %v1848, %v1849
    %v1851 = vrcp.pop %v1843
    %v1852 = vrcp.pop %v1850
    %v1853 = vmul.f32 %v1835, %v1851
    %v1854 = vmul.f32 %v1836, %v1852
    %1856 = vset.pattern.permute.xlu0 0
    %1857 = vperm.xlu0 %1856, %v1853
    %v1858 = vpop.permute.xlu0 %1857
    %1861 = vset.pattern.permute.xlu0 0
    %1862 = vperm.xlu0 %1861, %v1854
    %v1863 = vpop.permute.xlu0 %1862
    %v1865 = vmul.f32 %v1858, %v1677
    %v1866 = vmul.f32 %v1863, %v1682
    %v1867 = vsel %vm802, %v1865, 0.0
    %v1868 = vrot.slane %v1867, 4
    %v1869 = vadd.f32 %v1867, %v1868
    %v1870 = vrot.slane %v1869, 2
    %v1871 = vadd.f32 %v1869, %v1870
    %v1872 = vrot.slane %v1871, 1
    %v1873 = vadd.f32 %v1871, %v1872
    %v1874 = vsel %vm802, %v1866, 0.0
    %v1875 = vrot.slane %v1874, 4
    %v1876 = vadd.f32 %v1874, %v1875
    %v1877 = vrot.slane %v1876, 2
    %v1878 = vadd.f32 %v1876, %v1877
    %v1879 = vrot.slane %v1878, 1
    %v1880 = vadd.f32 %v1878, %v1879
    %1881 = vst.msk [vmem:[%s21] sm:$0xff] %vm1099, %v1853
    %1882 = vst.msk [vmem:[%s21 + $0x8] sm:$0xff] %vm1099, %v1854
    %v1883 = vld [vmem:[%s17] sm:$0xff]
    %v1884 = vld [vmem:[%s17 + $0x8] sm:$0xff]
    %v1885 = vld [vmem:[%s18] sm:$0x1]
    %v1887 = vlaneseq
    %v1888 = vshrl.u32 %v1887, 7
    %v1889 = vsub.s32 0, %v1888
    %v1890 = vrot.slane %v1885, %v1889
    %v1894 = vsel %vm1433, %v1880, %v1873
    %v1895 = vsel %vm802, %v1894, 0
    %1897 = vmatprep.subr.mxu0 0.0
    %1898 = vmatpush1.msra.mxu0 0.0
    %1899 = vmatprep.subr.mxu0 0.0
    %1900 = vmatpush1.msra.mxu0 0.0
    %1901 = vmatprep.subr.mxu0 0.0
    %1902 = vmatpush1.msra.mxu0 0.0
    %1903 = vmatprep.subr.mxu0 0.0
    %1904 = vmatpush1.msra.mxu0 0.0
    %1905 = vmatprep.subr.mxu0 0.0
    %1906 = vmatpush1.msra.mxu0 0.0
    %1907 = vmatprep.subr.mxu0 0.0
    %1908 = vmatpush1.msra.mxu0 0.0
    %1909 = vmatprep.subr.mxu0 0.0
    %1910 = vmatpush1.msra.mxu0 0.0
    %1911 = vmatprep.subr.mxu0 0.0
    %1912 = vmatpush1.msra.mxu0 0.0
    %1913 = vmatprep.subr.mxu0 0.0
    %1914 = vmatpush1.msra.mxu0 0.0
    %1915 = vmatprep.subr.mxu0 0.0
    %1916 = vmatpush1.msra.mxu0 0.0
    %1917 = vmatprep.subr.mxu0 0.0
    %1918 = vmatpush1.msra.mxu0 0.0
    %1919 = vmatprep.subr.mxu0 0.0
    %1920 = vmatpush1.msra.mxu0 0.0
    %1921 = vmatprep.subr.mxu0 0.0
    %1922 = vmatpush1.msra.mxu0 0.0
    %1923 = vmatprep.subr.mxu0 0.0
    %1924 = vmatpush1.msra.mxu0 0.0
    %1925 = vmatprep.subr.mxu0 0.0
    %1926 = vmatpush1.msra.mxu0 %v1884
    %1927 = vmatprep.subr.mxu0 0.0
    %1928 = vmatpush1.msra.mxu0 %v1883
    %1929 = vmatprep.subr.mxu0 0.0
    %1930 = vmatpush2.msra.mxu0 0.0
    %1931 = vmatprep.subr.mxu0 0.0
    %1932 = vmatpush2.msra.mxu0 0.0
    %1933 = vmatprep.subr.mxu0 0.0
    %1934 = vmatpush2.msra.mxu0 0.0
    %1935 = vmatprep.subr.mxu0 0.0
    %1936 = vmatpush2.msra.mxu0 0.0
    %1937 = vmatprep.subr.mxu0 0.0
    %1938 = vmatpush2.msra.mxu0 0.0
    %1939 = vmatprep.subr.mxu0 0.0
    %1940 = vmatpush2.msra.mxu0 0.0
    %1941 = vmatprep.subr.mxu0 0.0
    %1942 = vmatpush2.msra.mxu0 0.0
    %1943 = vmatprep.subr.mxu0 0.0
    %1944 = vmatpush2.msra.mxu0 0.0
    %1945 = vmatprep.subr.mxu0 0.0
    %1946 = vmatpush2.msra.mxu0 0.0
    %1947 = vmatprep.subr.mxu0 0.0
    %1948 = vmatpush2.msra.mxu0 0.0
    %1949 = vmatprep.subr.mxu0 0.0
    %1950 = vmatpush2.msra.mxu0 0.0
    %1951 = vmatprep.subr.mxu0 0.0
    %1952 = vmatpush2.msra.mxu0 0.0
    %1953 = vmatprep.subr.mxu0 0.0
    %1954 = vmatpush2.msra.mxu0 0.0
    %1955 = vmatprep.subr.mxu0 0.0
    %1956 = vmatpush2.msra.mxu0 0.0
    %1957 = vmatprep.subr.mxu0 0.0
    %1958 = vmatpush2.msra.mxu0 0.0
    %1959 = vmatprep.subr.mxu0 0.0
    %1960 = vmatpush2.msra.mxu0 0.0
    %1961 = vmatprep.mubr.f32.mxu0 0.0
    %1962 = vmatmul.mubr.f32.gmra.mxu0 %v1895
    %v1963 = vpop.f32.mrf.mxu0
    %v1964 = vadd.f32 %v1890, %v1963
    %v1965 = vpop.f32.mrf.mxu0
    %1966 = vdwg.mxu0
    %vm1967 = vcmask 33792
    %1968 = vst.msk [vmem:[#allocation6] sm:$0x3] %vm1967, %v1964
    // Predicated region
    $region78: #{han_model_cnn_forward.1} parent=1 // pred_check
      _
    $region79: #{han_model_cnn_forward.1} parent=1 // pred_check_branch
      %1970 = sbr.rel (0) target = $region81
    $region80: #{han_model_cnn_forward.1} parent=1 // pred_region
      %s1972 = ssub.s32 32, 32
      %1973 = vsyncadd [#allocation7], %s1972
      %s1975 = sshll.u32 [#allocation6], 4
      %s1976 = int_to_ptr.vmem [resolvable:$true] %s1975
      %1978 = dma.vmem_to_hbm [thread:$0]  %s1976, 32, %s19, [#allocation7]
    $region81: #{han_model_cnn_forward.1} parent=1 // pred_fallthru
      _
    // Predicated region
    $region82: #{han_model_cnn_forward.1} parent=1 // pred_check
      _
    $region83: #{han_model_cnn_forward.1} parent=1 // pred_check_branch
      %1980 = sbr.rel (0) target = $region85
    $region84: #{han_model_cnn_forward.1} parent=1 // pred_region
      _
    $region85: #{han_model_cnn_forward.1} parent=1 // pred_fallthru
      _
    // Predicated region
    $region86: #{han_model_cnn_forward.1} parent=1 // pred_check
      _
    $region87: #{han_model_cnn_forward.1} parent=1 // pred_check_branch
      %1982 = sbr.rel (0) target = $region89
    $region88: #{han_model_cnn_forward.1} parent=1 // pred_region
      _
    $region89: #{han_model_cnn_forward.1} parent=1 // pred_fallthru
      _
    // Predicated region
    $region90: #{han_model_cnn_forward.1} parent=1 // pred_check
      _
    $region91: #{han_model_cnn_forward.1} parent=1 // pred_check_branch
      %1984 = sbr.rel (0) target = $region93
    $region92: #{han_model_cnn_forward.1} parent=1 // pred_region
      %1985 = dma.done [#allocation7], 32
    $region93: #{han_model_cnn_forward.1} parent=1 // pred_fallthru
      _
    // Predicated region
    $region94: #{han_model_cnn_forward.1} parent=1 // pred_check
      _
    $region95: #{han_model_cnn_forward.1} parent=1 // pred_check_branch
      %1987 = sbr.rel (0) target = $region97
    $region96: #{han_model_cnn_forward.1} parent=1 // pred_region
      _
    $region97: #{han_model_cnn_forward.1} parent=1 // pred_fallthru
      _
    // Predicated region
    $region98: #{han_model_cnn_forward.1} parent=1 // pred_check
      _
    $region99: #{han_model_cnn_forward.1} parent=1 // pred_check_branch
      %1989 = sbr.rel (0) target = $region101
    $region100: #{han_model_cnn_forward.1} parent=1 // pred_region
      _
    $region101: #{han_model_cnn_forward.1} parent=1 // pred_fallthru
      _
    %1990 = vsyncpa [#allocation7], 1

</llo_original>
